<compile_context>
chip_gen: v6e
topology: v6e:2x2x1
jax: 0.10.0
libtpu: 0.0.40
codegen_flags: <defaults>
</compile_context>

<pallas_src>
import math
from functools import partial

import jax
import jax.numpy as jnp
from jax.experimental import pallas as pl
from jax.experimental.pallas import tpu as pltpu


# --------------------------------------------------------------------------- #
# Fused kernel: separable 4x4 resample filter + 3x3 stride-2 conv + bias.
# --------------------------------------------------------------------------- #
def _fused_filter_conv_kernel(xee_ref, xeo_ref, xoe_ref, xoo_ref, w_ref, b_ref,
                              o_ref, *, toh, ow, ky_taps, kx_taps):
    """One (batch, output-row-tile) grid step.

    x??_ref : (Hp/2, Wp/2, C) parity planes of the zero-padded NHWC input
              (first letter = row parity, second letter = column parity).
    w_ref   : (9, C, F) conv weight, tap-major (index = ky*3 + kx).
    b_ref   : (1, F)    conv bias.
    o_ref   : (toh*ow, F) output tokens for this row tile (channels on lanes).
    """
    t = pl.program_id(1)
    r0 = pl.multiple_of(t * toh, toh)          # first output row of this tile
    rows = toh + 2                             # parity-plane rows needed (2-row halo)

    # Contiguous row windows of the four parity planes (dynamic start, outer dim).
    xee = xee_ref[pl.ds(r0, rows), :, :]       # even rows / even cols
    xeo = xeo_ref[pl.ds(r0, rows), :, :]       # even rows / odd  cols
    xoe = xoe_ref[pl.ds(r0, rows), :, :]       # odd  rows / even cols
    xoo = xoo_ref[pl.ds(r0, rows), :, :]       # odd  rows / odd  cols

    # ---- horizontal filter pass: 4 taps, contiguous column slices only ------ #
    k0, k1, k2, k3 = kx_taps

    def hpass(xev, xod):
        # horizontally-filtered rows at even output columns 2p (p = 0..ow)
        h_ec = (k0 * xev[:, 0:ow + 1, :] + k1 * xod[:, 0:ow + 1, :]
                + k2 * xev[:, 1:ow + 2, :] + k3 * xod[:, 1:ow + 2, :])
        # ... and at odd output columns 2p+1 (p = 0..ow-1)
        h_oc = (k0 * xod[:, 0:ow, :] + k1 * xev[:, 1:ow + 1, :]
                + k2 * xod[:, 1:ow + 1, :] + k3 * xev[:, 2:ow + 2, :])
        return h_ec, h_oc

    heE, heO = hpass(xee, xeo)                 # from even input rows
    hoE, hoO = hpass(xoe, xoo)                 # from odd  input rows

    # ---- vertical filter pass: 4 taps, cheap row selects -------------------- #
    g0, g1, g2, g3 = ky_taps

    def vpass(he, ho):
        # filtered rows 2q (q = 0..toh) and 2q+1 (q = 0..toh-1), one column parity
        v_er = (g0 * he[0:toh + 1] + g1 * ho[0:toh + 1]
                + g2 * he[1:toh + 2] + g3 * ho[1:toh + 2])
        v_or = (g0 * ho[0:toh] + g1 * he[1:toh + 1]
                + g2 * ho[1:toh + 1] + g3 * he[2:toh + 2])
        return v_er, v_or

    vEE, vOE = vpass(heE, hoE)                 # even cols: (toh+1, ow+1, C), (toh, ow+1, C)
    vEO, vOO = vpass(heO, hoO)                 # odd  cols: (toh+1, ow,   C), (toh, ow,   C)
    vplanes = {(0, 0): vEE, (0, 1): vEO, (1, 0): vOE, (1, 1): vOO}

    # ---- 3x3 stride-2 conv: 9 shifted-slice dots, f32 MXU accumulation ------ #
    ntok = toh * ow
    f_out = o_ref.shape[-1]
    acc = jnp.zeros((ntok, f_out), jnp.float32)
    for ky in range(3):
        for kx in range(3):
            v = vplanes[(ky % 2, kx % 2)]
            tap = v[ky // 2: ky // 2 + toh, kx // 2: kx // 2 + ow, :]
            acc = acc + jnp.dot(tap.reshape(ntok, tap.shape[-1]),
                                w_ref[ky * 3 + kx],
                                preferred_element_type=jnp.float32)
    o_ref[...] = (acc + b_ref[...]).astype(o_ref.dtype)


# --------------------------------------------------------------------------- #
# Wrapper / glue
# --------------------------------------------------------------------------- #
def _choose_row_tile(oh, ow, cap_tokens=2048):
    """Largest divisor of `oh` whose tile has <= cap_tokens output tokens and a
    sublane-aligned (multiple of 8) token count; falls back to the full height."""
    for toh in range(oh, 0, -1):
        if oh % toh == 0 and toh * ow <= cap_tokens and (toh * ow) % 8 == 0:
            return toh
    return oh


def prepare_conv_params(weight_oihw, bias):
    """Hoisted out of the jitted forward: reshape the PyTorch conv weight once."""
    f_out, c_in, kh, kw = weight_oihw.shape
    assert kh == 3 and kw == 3, "kernel is specialized to kernel_shape=3"
    w_taps = jnp.transpose(jnp.asarray(weight_oihw, jnp.float32),
                           (2, 3, 1, 0)).reshape(kh * kw, c_in, f_out)
    b2d = jnp.asarray(bias, jnp.float32).reshape(1, f_out)
    return w_taps, b2d


def conv_downsample2d_forward(x_nchw, w_taps, bias2d, *,
                              resample_taps=(1.0, 3.0, 3.0, 1.0),
                              gain=1.0,
                              downsample_factor=2,
                              block_out_rows=None,
                              vmem_limit_bytes=32 * 1024 * 1024):
    """Forward of ConvDownsample2D (4-tap resample kernel, 3x3 conv, stride 2)."""
    if downsample_factor != 2:
        raise NotImplementedError("fused kernel is specialized to downsample_factor=2")
    assert len(resample_taps) == 4, "kernel is specialized to a 4-tap resample kernel"
    ntap9, c_in, f_out = w_taps.shape
    assert ntap9 == 9, "kernel is specialized to kernel_shape=3"
    n, cx, h, w = x_nchw.shape
    assert cx == c_in
    assert h % 2 == 0 and w % 2 == 0, "H and W must be even"

    ck, s, kw = 3, downsample_factor, 4
    pad0 = (kw - s + ck) // 2            # height pad (both sides)  = 2
    pad1 = (kw - s + ck - 1) // 2        # width  pad (both sides)  = 2
    hp, wp = h + 2 * pad0, w + 2 * pad1
    oh = (hp - kw + 1 - ck) // s + 1
    ow = (wp - kw + 1 - ck) // s + 1

    # Separable filter taps: outer(rk, rk) * gain / outer.sum()
    rk = [float(v) for v in resample_taps]
    rksum = sum(rk)
    ky_taps = tuple(v * float(gain) / rksum for v in rk)
    kx_taps = tuple(v / rksum for v in rk)

    toh = block_out_rows if block_out_rows is not None else _choose_row_tile(oh, ow)
    assert oh % toh == 0, "block_out_rows must divide the output height"
    if toh != oh and (toh * ow) % 8 != 0:
        toh = oh                          # keep the output block sublane-aligned
    n_row_tiles = oh // toh

    # NHWC, zero-pad, then space-to-depth into 4 parity planes (same total bytes
    # as the padded input — no im2col amplification; fuses with the pad in XLA).
    x = jnp.transpose(x_nchw, (0, 2, 3, 1)).astype(jnp.float32)
    xpad = jnp.pad(x, ((0, 0), (pad0, pad0), (pad1, pad1), (0, 0)))
    xee = xpad[:, 0::2, 0::2, :]
    xeo = xpad[:, 0::2, 1::2, :]
    xoe = xpad[:, 1::2, 0::2, :]
    xoo = xpad[:, 1::2, 1::2, :]
    hp2, wp2 = hp // 2, wp // 2

    plane_spec = pl.BlockSpec((None, hp2, wp2, c_in), lambda bn, bt: (bn, 0, 0, 0))
    kernel = partial(_fused_filter_conv_kernel, toh=toh, ow=ow,
                     ky_taps=ky_taps, kx_taps=kx_taps)

    out_tok = pl.pallas_call(
        kernel,
        out_shape=jax.ShapeDtypeStruct((n, oh * ow, f_out), jnp.float32),
        grid=(n, n_row_tiles),
        in_specs=[plane_spec, plane_spec, plane_spec, plane_spec,
                  pl.BlockSpec((9, c_in, f_out), lambda bn, bt: (0, 0, 0)),
                  pl.BlockSpec((1, f_out), lambda bn, bt: (0, 0))],
        out_specs=pl.BlockSpec((None, toh * ow, f_out), lambda bn, bt: (bn, bt, 0)),
        compiler_params=pltpu.CompilerParams(
            dimension_semantics=("parallel", "parallel"),
            vmem_limit_bytes=vmem_limit_bytes),
    )(xee, xeo, xoe, xoo, w_taps, bias2d)

    return jnp.transpose(out_tok.reshape(n, oh, ow, f_out), (0, 3, 1, 2))   # NCHW


# --------------------------------------------------------------------------- #
# Pure-XLA reference (mirrors the PyTorch module) for correctness checking.
# --------------------------------------------------------------------------- #
def _reference_forward(x_nchw, weight_oihw, bias, resample_taps, gain, s):
    rk = jnp.asarray(resample_taps, jnp.float32)
    k2d = rk[:, None] * rk[None, :]
    k2d = k2d * gain / jnp.sum(k2d)
    c = x_nchw.shape[1]
    ck = weight_oihw.shape[-1]
    kw = rk.shape[0]
    pad0 = (kw - s + ck) // 2
    pad1 = (kw - s + ck - 1) // 2
    depthwise = jnp.broadcast_to(k2d[None, None], (c, 1, kw, kw))
    y = jax.lax.conv_general_dilated(
        x_nchw, depthwise, window_strides=(1, 1),
        padding=((pad0, pad0), (pad1, pad1)), feature_group_count=c,
        dimension_numbers=("NCHW", "OIHW", "NCHW"),
        precision=jax.lax.Precision.HIGHEST)
    out = jax.lax.conv_general_dilated(
        y, weight_oihw, window_strides=(s, s), padding=((0, 0), (0, 0)),
        dimension_numbers=("NCHW", "OIHW", "NCHW"),
        precision=jax.lax.Precision.HIGHEST)
    return out + bias[None, :, None, None]


if __name__ == "__main__":
    key = jax.random.PRNGKey(0)
    k_x, k_w, k_b = jax.random.split(key, 3)

    N, C, H, W = 2, 4, 16, 16
    OUT_CH = 32
    RESAMPLE = (1.0, 3.0, 3.0, 1.0)
    GAIN = 1.0
    DOWN = 2

    x = jax.random.normal(k_x, (N, C, H, W), jnp.float32)
    bound = 1.0 / math.sqrt(C * 9)
    w = jax.random.uniform(k_w, (OUT_CH, C, 3, 3), jnp.float32, -bound, bound)
    b = jax.random.uniform(k_b, (OUT_CH,), jnp.float32, -bound, bound)

    w_taps, b2d = prepare_conv_params(w, b)        # hoisted out of the jitted path

    fwd = jax.jit(partial(conv_downsample2d_forward,
                          resample_taps=RESAMPLE, gain=GAIN,
                          downsample_factor=DOWN, block_out_rows=4))
    out = jax.block_until_ready(fwd(x, w_taps, b2d))

    assert out.shape == (N, OUT_CH, H // DOWN, W // DOWN), out.shape
    assert bool(jnp.all(jnp.isfinite(out)))

    ref = jax.block_until_ready(_reference_forward(x, w, b, RESAMPLE, GAIN, DOWN))
    err = float(jnp.max(jnp.abs(out - ref)))
    assert err < 5e-3, f"max abs error {err}"

    print("KERNEL_OK")
</pallas_src>

<mosaic_0001>
module attributes {stable_mosaic.version = 11 : i64} {
  func.func @_fused_filter_conv_kernel(%arg0: i32, %arg1: i32, %arg2: memref<1x10x10x4xf32, #tpu.memory_space<vmem>>, %arg3: memref<1x10x10x4xf32, #tpu.memory_space<vmem>>, %arg4: memref<1x10x10x4xf32, #tpu.memory_space<vmem>>, %arg5: memref<1x10x10x4xf32, #tpu.memory_space<vmem>>, %arg6: memref<9x4x32xf32, #tpu.memory_space<vmem>>, %arg7: memref<1x32xf32, #tpu.memory_space<vmem>>, %arg8: memref<1x32x32xf32, #tpu.memory_space<vmem>>) attributes {dimension_semantics = [#tpu.dimension_semantics<parallel>, #tpu.dimension_semantics<parallel>], iteration_bounds = array<i64: 2, 2>, scalar_prefetch = 0 : i64, scratch_operands = 0 : i64, tpu.core_type = #tpu.core_type<tc>, window_params = [{transform_indices = @transform_0, window_bounds = array<i64: 1, 10, 10, 4>}, {transform_indices = @transform_1, window_bounds = array<i64: 1, 10, 10, 4>}, {transform_indices = @transform_2, window_bounds = array<i64: 1, 10, 10, 4>}, {transform_indices = @transform_3, window_bounds = array<i64: 1, 10, 10, 4>}, {pipeline_mode = #tpu.pipeline_mode<synchronous>, transform_indices = @transform_4, window_bounds = array<i64: 9, 4, 32>}, {pipeline_mode = #tpu.pipeline_mode<synchronous>, transform_indices = @transform_5, window_bounds = array<i64: 1, 32>}, {transform_indices = @transform_6, window_bounds = array<i64: 1, 32, 32>}]} {
    %c4_i32 = arith.constant 4 : i32
    %0 = arith.muli %arg1, %c4_i32 : i32
    %1 = tpu.assume_multiple %0, 4 : i32
    %c0 = arith.constant 0 : index
    %2 = arith.index_cast %1 : i32 to index
    %c0_0 = arith.constant 0 : index
    %c0_1 = arith.constant 0 : index
    %3 = vector.load %arg2[%c0, %2, %c0_0, %c0_1] : memref<1x10x10x4xf32, #tpu.memory_space<vmem>>, vector<1x6x10x4xf32>
    %4 = vector.shape_cast %3 : vector<1x6x10x4xf32> to vector<6x10x4xf32>
    %c0_2 = arith.constant 0 : index
    %5 = arith.index_cast %1 : i32 to index
    %c0_3 = arith.constant 0 : index
    %c0_4 = arith.constant 0 : index
    %6 = vector.load %arg3[%c0_2, %5, %c0_3, %c0_4] : memref<1x10x10x4xf32, #tpu.memory_space<vmem>>, vector<1x6x10x4xf32>
    %7 = vector.shape_cast %6 : vector<1x6x10x4xf32> to vector<6x10x4xf32>
    %c0_5 = arith.constant 0 : index
    %8 = arith.index_cast %1 : i32 to index
    %c0_6 = arith.constant 0 : index
    %c0_7 = arith.constant 0 : index
    %9 = vector.load %arg4[%c0_5, %8, %c0_6, %c0_7] : memref<1x10x10x4xf32, #tpu.memory_space<vmem>>, vector<1x6x10x4xf32>
    %10 = vector.shape_cast %9 : vector<1x6x10x4xf32> to vector<6x10x4xf32>
    %c0_8 = arith.constant 0 : index
    %11 = arith.index_cast %1 : i32 to index
    %c0_9 = arith.constant 0 : index
    %c0_10 = arith.constant 0 : index
    %12 = vector.load %arg5[%c0_8, %11, %c0_9, %c0_10] : memref<1x10x10x4xf32, #tpu.memory_space<vmem>>, vector<1x6x10x4xf32>
    %13 = vector.shape_cast %12 : vector<1x6x10x4xf32> to vector<6x10x4xf32>
    %14 = vector.extract_strided_slice %4 {offsets = [0, 0, 0], sizes = [6, 9, 4], strides = [1, 1, 1]} : vector<6x10x4xf32> to vector<6x9x4xf32>
    %cst = arith.constant 1.250000e-01 : f32
    %15 = vector.broadcast %cst : f32 to vector<6x9x4xf32>
    %16 = arith.mulf %15, %14 : vector<6x9x4xf32>
    %17 = vector.extract_strided_slice %7 {offsets = [0, 0, 0], sizes = [6, 9, 4], strides = [1, 1, 1]} : vector<6x10x4xf32> to vector<6x9x4xf32>
    %cst_11 = arith.constant 3.750000e-01 : f32
    %18 = vector.broadcast %cst_11 : f32 to vector<6x9x4xf32>
    %19 = arith.mulf %18, %17 : vector<6x9x4xf32>
    %20 = arith.addf %16, %19 : vector<6x9x4xf32>
    %21 = vector.extract_strided_slice %4 {offsets = [0, 1, 0], sizes = [6, 9, 4], strides = [1, 1, 1]} : vector<6x10x4xf32> to vector<6x9x4xf32>
    %cst_12 = arith.constant 3.750000e-01 : f32
    %22 = vector.broadcast %cst_12 : f32 to vector<6x9x4xf32>
    %23 = arith.mulf %22, %21 : vector<6x9x4xf32>
    %24 = arith.addf %20, %23 : vector<6x9x4xf32>
    %25 = vector.extract_strided_slice %7 {offsets = [0, 1, 0], sizes = [6, 9, 4], strides = [1, 1, 1]} : vector<6x10x4xf32> to vector<6x9x4xf32>
    %cst_13 = arith.constant 1.250000e-01 : f32
    %26 = vector.broadcast %cst_13 : f32 to vector<6x9x4xf32>
    %27 = arith.mulf %26, %25 : vector<6x9x4xf32>
    %28 = arith.addf %24, %27 : vector<6x9x4xf32>
    %29 = vector.extract_strided_slice %7 {offsets = [0, 0, 0], sizes = [6, 8, 4], strides = [1, 1, 1]} : vector<6x10x4xf32> to vector<6x8x4xf32>
    %cst_14 = arith.constant 1.250000e-01 : f32
    %30 = vector.broadcast %cst_14 : f32 to vector<6x8x4xf32>
    %31 = arith.mulf %30, %29 : vector<6x8x4xf32>
    %32 = vector.extract_strided_slice %4 {offsets = [0, 1, 0], sizes = [6, 8, 4], strides = [1, 1, 1]} : vector<6x10x4xf32> to vector<6x8x4xf32>
    %cst_15 = arith.constant 3.750000e-01 : f32
    %33 = vector.broadcast %cst_15 : f32 to vector<6x8x4xf32>
    %34 = arith.mulf %33, %32 : vector<6x8x4xf32>
    %35 = arith.addf %31, %34 : vector<6x8x4xf32>
    %36 = vector.extract_strided_slice %7 {offsets = [0, 1, 0], sizes = [6, 8, 4], strides = [1, 1, 1]} : vector<6x10x4xf32> to vector<6x8x4xf32>
    %cst_16 = arith.constant 3.750000e-01 : f32
    %37 = vector.broadcast %cst_16 : f32 to vector<6x8x4xf32>
    %38 = arith.mulf %37, %36 : vector<6x8x4xf32>
    %39 = arith.addf %35, %38 : vector<6x8x4xf32>
    %40 = vector.extract_strided_slice %4 {offsets = [0, 2, 0], sizes = [6, 8, 4], strides = [1, 1, 1]} : vector<6x10x4xf32> to vector<6x8x4xf32>
    %cst_17 = arith.constant 1.250000e-01 : f32
    %41 = vector.broadcast %cst_17 : f32 to vector<6x8x4xf32>
    %42 = arith.mulf %41, %40 : vector<6x8x4xf32>
    %43 = arith.addf %39, %42 : vector<6x8x4xf32>
    %44 = vector.extract_strided_slice %10 {offsets = [0, 0, 0], sizes = [6, 9, 4], strides = [1, 1, 1]} : vector<6x10x4xf32> to vector<6x9x4xf32>
    %cst_18 = arith.constant 1.250000e-01 : f32
    %45 = vector.broadcast %cst_18 : f32 to vector<6x9x4xf32>
    %46 = arith.mulf %45, %44 : vector<6x9x4xf32>
    %47 = vector.extract_strided_slice %13 {offsets = [0, 0, 0], sizes = [6, 9, 4], strides = [1, 1, 1]} : vector<6x10x4xf32> to vector<6x9x4xf32>
    %cst_19 = arith.constant 3.750000e-01 : f32
    %48 = vector.broadcast %cst_19 : f32 to vector<6x9x4xf32>
    %49 = arith.mulf %48, %47 : vector<6x9x4xf32>
    %50 = arith.addf %46, %49 : vector<6x9x4xf32>
    %51 = vector.extract_strided_slice %10 {offsets = [0, 1, 0], sizes = [6, 9, 4], strides = [1, 1, 1]} : vector<6x10x4xf32> to vector<6x9x4xf32>
    %cst_20 = arith.constant 3.750000e-01 : f32
    %52 = vector.broadcast %cst_20 : f32 to vector<6x9x4xf32>
    %53 = arith.mulf %52, %51 : vector<6x9x4xf32>
    %54 = arith.addf %50, %53 : vector<6x9x4xf32>
    %55 = vector.extract_strided_slice %13 {offsets = [0, 1, 0], sizes = [6, 9, 4], strides = [1, 1, 1]} : vector<6x10x4xf32> to vector<6x9x4xf32>
    %cst_21 = arith.constant 1.250000e-01 : f32
    %56 = vector.broadcast %cst_21 : f32 to vector<6x9x4xf32>
    %57 = arith.mulf %56, %55 : vector<6x9x4xf32>
    %58 = arith.addf %54, %57 : vector<6x9x4xf32>
    %59 = vector.extract_strided_slice %13 {offsets = [0, 0, 0], sizes = [6, 8, 4], strides = [1, 1, 1]} : vector<6x10x4xf32> to vector<6x8x4xf32>
    %cst_22 = arith.constant 1.250000e-01 : f32
    %60 = vector.broadcast %cst_22 : f32 to vector<6x8x4xf32>
    %61 = arith.mulf %60, %59 : vector<6x8x4xf32>
    %62 = vector.extract_strided_slice %10 {offsets = [0, 1, 0], sizes = [6, 8, 4], strides = [1, 1, 1]} : vector<6x10x4xf32> to vector<6x8x4xf32>
    %cst_23 = arith.constant 3.750000e-01 : f32
    %63 = vector.broadcast %cst_23 : f32 to vector<6x8x4xf32>
    %64 = arith.mulf %63, %62 : vector<6x8x4xf32>
    %65 = arith.addf %61, %64 : vector<6x8x4xf32>
    %66 = vector.extract_strided_slice %13 {offsets = [0, 1, 0], sizes = [6, 8, 4], strides = [1, 1, 1]} : vector<6x10x4xf32> to vector<6x8x4xf32>
    %cst_24 = arith.constant 3.750000e-01 : f32
    %67 = vector.broadcast %cst_24 : f32 to vector<6x8x4xf32>
    %68 = arith.mulf %67, %66 : vector<6x8x4xf32>
    %69 = arith.addf %65, %68 : vector<6x8x4xf32>
    %70 = vector.extract_strided_slice %10 {offsets = [0, 2, 0], sizes = [6, 8, 4], strides = [1, 1, 1]} : vector<6x10x4xf32> to vector<6x8x4xf32>
    %cst_25 = arith.constant 1.250000e-01 : f32
    %71 = vector.broadcast %cst_25 : f32 to vector<6x8x4xf32>
    %72 = arith.mulf %71, %70 : vector<6x8x4xf32>
    %73 = arith.addf %69, %72 : vector<6x8x4xf32>
    %74 = vector.extract_strided_slice %28 {offsets = [0, 0, 0], sizes = [5, 9, 4], strides = [1, 1, 1]} : vector<6x9x4xf32> to vector<5x9x4xf32>
    %cst_26 = arith.constant 1.250000e-01 : f32
    %75 = vector.broadcast %cst_26 : f32 to vector<5x9x4xf32>
    %76 = arith.mulf %75, %74 : vector<5x9x4xf32>
    %77 = vector.extract_strided_slice %58 {offsets = [0, 0, 0], sizes = [5, 9, 4], strides = [1, 1, 1]} : vector<6x9x4xf32> to vector<5x9x4xf32>
    %cst_27 = arith.constant 3.750000e-01 : f32
    %78 = vector.broadcast %cst_27 : f32 to vector<5x9x4xf32>
    %79 = arith.mulf %78, %77 : vector<5x9x4xf32>
    %80 = arith.addf %76, %79 : vector<5x9x4xf32>
    %81 = vector.extract_strided_slice %28 {offsets = [1, 0, 0], sizes = [5, 9, 4], strides = [1, 1, 1]} : vector<6x9x4xf32> to vector<5x9x4xf32>
    %cst_28 = arith.constant 3.750000e-01 : f32
    %82 = vector.broadcast %cst_28 : f32 to vector<5x9x4xf32>
    %83 = arith.mulf %82, %81 : vector<5x9x4xf32>
    %84 = arith.addf %80, %83 : vector<5x9x4xf32>
    %85 = vector.extract_strided_slice %58 {offsets = [1, 0, 0], sizes = [5, 9, 4], strides = [1, 1, 1]} : vector<6x9x4xf32> to vector<5x9x4xf32>
    %cst_29 = arith.constant 1.250000e-01 : f32
    %86 = vector.broadcast %cst_29 : f32 to vector<5x9x4xf32>
    %87 = arith.mulf %86, %85 : vector<5x9x4xf32>
    %88 = arith.addf %84, %87 : vector<5x9x4xf32>
    %89 = vector.extract_strided_slice %58 {offsets = [0, 0, 0], sizes = [4, 9, 4], strides = [1, 1, 1]} : vector<6x9x4xf32> to vector<4x9x4xf32>
    %cst_30 = arith.constant 1.250000e-01 : f32
    %90 = vector.broadcast %cst_30 : f32 to vector<4x9x4xf32>
    %91 = arith.mulf %90, %89 : vector<4x9x4xf32>
    %92 = vector.extract_strided_slice %28 {offsets = [1, 0, 0], sizes = [4, 9, 4], strides = [1, 1, 1]} : vector<6x9x4xf32> to vector<4x9x4xf32>
    %cst_31 = arith.constant 3.750000e-01 : f32
    %93 = vector.broadcast %cst_31 : f32 to vector<4x9x4xf32>
    %94 = arith.mulf %93, %92 : vector<4x9x4xf32>
    %95 = arith.addf %91, %94 : vector<4x9x4xf32>
    %96 = vector.extract_strided_slice %58 {offsets = [1, 0, 0], sizes = [4, 9, 4], strides = [1, 1, 1]} : vector<6x9x4xf32> to vector<4x9x4xf32>
    %cst_32 = arith.constant 3.750000e-01 : f32
    %97 = vector.broadcast %cst_32 : f32 to vector<4x9x4xf32>
    %98 = arith.mulf %97, %96 : vector<4x9x4xf32>
    %99 = arith.addf %95, %98 : vector<4x9x4xf32>
    %100 = vector.extract_strided_slice %28 {offsets = [2, 0, 0], sizes = [4, 9, 4], strides = [1, 1, 1]} : vector<6x9x4xf32> to vector<4x9x4xf32>
    %cst_33 = arith.constant 1.250000e-01 : f32
    %101 = vector.broadcast %cst_33 : f32 to vector<4x9x4xf32>
    %102 = arith.mulf %101, %100 : vector<4x9x4xf32>
    %103 = arith.addf %99, %102 : vector<4x9x4xf32>
    %104 = vector.extract_strided_slice %43 {offsets = [0, 0, 0], sizes = [5, 8, 4], strides = [1, 1, 1]} : vector<6x8x4xf32> to vector<5x8x4xf32>
    %cst_34 = arith.constant 1.250000e-01 : f32
    %105 = vector.broadcast %cst_34 : f32 to vector<5x8x4xf32>
    %106 = arith.mulf %105, %104 : vector<5x8x4xf32>
    %107 = vector.extract_strided_slice %73 {offsets = [0, 0, 0], sizes = [5, 8, 4], strides = [1, 1, 1]} : vector<6x8x4xf32> to vector<5x8x4xf32>
    %cst_35 = arith.constant 3.750000e-01 : f32
    %108 = vector.broadcast %cst_35 : f32 to vector<5x8x4xf32>
    %109 = arith.mulf %108, %107 : vector<5x8x4xf32>
    %110 = arith.addf %106, %109 : vector<5x8x4xf32>
    %111 = vector.extract_strided_slice %43 {offsets = [1, 0, 0], sizes = [5, 8, 4], strides = [1, 1, 1]} : vector<6x8x4xf32> to vector<5x8x4xf32>
    %cst_36 = arith.constant 3.750000e-01 : f32
    %112 = vector.broadcast %cst_36 : f32 to vector<5x8x4xf32>
    %113 = arith.mulf %112, %111 : vector<5x8x4xf32>
    %114 = arith.addf %110, %113 : vector<5x8x4xf32>
    %115 = vector.extract_strided_slice %73 {offsets = [1, 0, 0], sizes = [5, 8, 4], strides = [1, 1, 1]} : vector<6x8x4xf32> to vector<5x8x4xf32>
    %cst_37 = arith.constant 1.250000e-01 : f32
    %116 = vector.broadcast %cst_37 : f32 to vector<5x8x4xf32>
    %117 = arith.mulf %116, %115 : vector<5x8x4xf32>
    %118 = arith.addf %114, %117 : vector<5x8x4xf32>
    %119 = vector.extract_strided_slice %73 {offsets = [0, 0, 0], sizes = [4, 8, 4], strides = [1, 1, 1]} : vector<6x8x4xf32> to vector<4x8x4xf32>
    %cst_38 = arith.constant 1.250000e-01 : f32
    %120 = vector.broadcast %cst_38 : f32 to vector<4x8x4xf32>
    %121 = arith.mulf %120, %119 : vector<4x8x4xf32>
    %122 = vector.extract_strided_slice %43 {offsets = [1, 0, 0], sizes = [4, 8, 4], strides = [1, 1, 1]} : vector<6x8x4xf32> to vector<4x8x4xf32>
    %cst_39 = arith.constant 3.750000e-01 : f32
    %123 = vector.broadcast %cst_39 : f32 to vector<4x8x4xf32>
    %124 = arith.mulf %123, %122 : vector<4x8x4xf32>
    %125 = arith.addf %121, %124 : vector<4x8x4xf32>
    %126 = vector.extract_strided_slice %73 {offsets = [1, 0, 0], sizes = [4, 8, 4], strides = [1, 1, 1]} : vector<6x8x4xf32> to vector<4x8x4xf32>
    %cst_40 = arith.constant 3.750000e-01 : f32
    %127 = vector.broadcast %cst_40 : f32 to vector<4x8x4xf32>
    %128 = arith.mulf %127, %126 : vector<4x8x4xf32>
    %129 = arith.addf %125, %128 : vector<4x8x4xf32>
    %130 = vector.extract_strided_slice %43 {offsets = [2, 0, 0], sizes = [4, 8, 4], strides = [1, 1, 1]} : vector<6x8x4xf32> to vector<4x8x4xf32>
    %cst_41 = arith.constant 1.250000e-01 : f32
    %131 = vector.broadcast %cst_41 : f32 to vector<4x8x4xf32>
    %132 = arith.mulf %131, %130 : vector<4x8x4xf32>
    %133 = arith.addf %129, %132 : vector<4x8x4xf32>
    %cst_42 = arith.constant 0.000000e+00 : f32
    %134 = vector.broadcast %cst_42 : f32 to vector<32x32xf32>
    %135 = vector.extract_strided_slice %88 {offsets = [0, 0, 0], sizes = [4, 8, 4], strides = [1, 1, 1]} : vector<5x9x4xf32> to vector<4x8x4xf32>
    %136 = vector.shape_cast %135 : vector<4x8x4xf32> to vector<32x4xf32>
    %c0_43 = arith.constant 0 : index
    %c0_44 = arith.constant 0 : index
    %c0_45 = arith.constant 0 : index
    %137 = vector.load %arg6[%c0_43, %c0_44, %c0_45] : memref<9x4x32xf32, #tpu.memory_space<vmem>>, vector<1x4x32xf32>
    %138 = vector.shape_cast %137 : vector<1x4x32xf32> to vector<4x32xf32>
    %cst_46 = arith.constant dense<0.000000e+00> : vector<32x32xf32>
    %139 = tpu.matmul %136, %138, %cst_46 {dimension_numbers = #tpu.dot_dimension_numbers<[1], [0], [0], [1], [0, 0, 1, 1], [], []>} : vector<32x4xf32>, vector<4x32xf32>, vector<32x32xf32> -> vector<32x32xf32>
    %140 = arith.addf %134, %139 : vector<32x32xf32>
    %141 = vector.extract_strided_slice %118 {offsets = [0, 0, 0], sizes = [4, 8, 4], strides = [1, 1, 1]} : vector<5x8x4xf32> to vector<4x8x4xf32>
    %142 = vector.shape_cast %141 : vector<4x8x4xf32> to vector<32x4xf32>
    %c1 = arith.constant 1 : index
    %c0_47 = arith.constant 0 : index
    %c0_48 = arith.constant 0 : index
    %143 = vector.load %arg6[%c1, %c0_47, %c0_48] : memref<9x4x32xf32, #tpu.memory_space<vmem>>, vector<1x4x32xf32>
    %144 = vector.shape_cast %143 : vector<1x4x32xf32> to vector<4x32xf32>
    %cst_49 = arith.constant dense<0.000000e+00> : vector<32x32xf32>
    %145 = tpu.matmul %142, %144, %cst_49 {dimension_numbers = #tpu.dot_dimension_numbers<[1], [0], [0], [1], [0, 0, 1, 1], [], []>} : vector<32x4xf32>, vector<4x32xf32>, vector<32x32xf32> -> vector<32x32xf32>
    %146 = arith.addf %140, %145 : vector<32x32xf32>
    %147 = vector.extract_strided_slice %88 {offsets = [0, 1, 0], sizes = [4, 8, 4], strides = [1, 1, 1]} : vector<5x9x4xf32> to vector<4x8x4xf32>
    %148 = vector.shape_cast %147 : vector<4x8x4xf32> to vector<32x4xf32>
    %c2 = arith.constant 2 : index
    %c0_50 = arith.constant 0 : index
    %c0_51 = arith.constant 0 : index
    %149 = vector.load %arg6[%c2, %c0_50, %c0_51] : memref<9x4x32xf32, #tpu.memory_space<vmem>>, vector<1x4x32xf32>
    %150 = vector.shape_cast %149 : vector<1x4x32xf32> to vector<4x32xf32>
    %cst_52 = arith.constant dense<0.000000e+00> : vector<32x32xf32>
    %151 = tpu.matmul %148, %150, %cst_52 {dimension_numbers = #tpu.dot_dimension_numbers<[1], [0], [0], [1], [0, 0, 1, 1], [], []>} : vector<32x4xf32>, vector<4x32xf32>, vector<32x32xf32> -> vector<32x32xf32>
    %152 = arith.addf %146, %151 : vector<32x32xf32>
    %153 = vector.extract_strided_slice %103 {offsets = [0, 0, 0], sizes = [4, 8, 4], strides = [1, 1, 1]} : vector<4x9x4xf32> to vector<4x8x4xf32>
    %154 = vector.shape_cast %153 : vector<4x8x4xf32> to vector<32x4xf32>
    %c3 = arith.constant 3 : index
    %c0_53 = arith.constant 0 : index
    %c0_54 = arith.constant 0 : index
    %155 = vector.load %arg6[%c3, %c0_53, %c0_54] : memref<9x4x32xf32, #tpu.memory_space<vmem>>, vector<1x4x32xf32>
    %156 = vector.shape_cast %155 : vector<1x4x32xf32> to vector<4x32xf32>
    %cst_55 = arith.constant dense<0.000000e+00> : vector<32x32xf32>
    %157 = tpu.matmul %154, %156, %cst_55 {dimension_numbers = #tpu.dot_dimension_numbers<[1], [0], [0], [1], [0, 0, 1, 1], [], []>} : vector<32x4xf32>, vector<4x32xf32>, vector<32x32xf32> -> vector<32x32xf32>
    %158 = arith.addf %152, %157 : vector<32x32xf32>
    %159 = vector.shape_cast %133 : vector<4x8x4xf32> to vector<32x4xf32>
    %c4 = arith.constant 4 : index
    %c0_56 = arith.constant 0 : index
    %c0_57 = arith.constant 0 : index
    %160 = vector.load %arg6[%c4, %c0_56, %c0_57] : memref<9x4x32xf32, #tpu.memory_space<vmem>>, vector<1x4x32xf32>
    %161 = vector.shape_cast %160 : vector<1x4x32xf32> to vector<4x32xf32>
    %cst_58 = arith.constant dense<0.000000e+00> : vector<32x32xf32>
    %162 = tpu.matmul %159, %161, %cst_58 {dimension_numbers = #tpu.dot_dimension_numbers<[1], [0], [0], [1], [0, 0, 1, 1], [], []>} : vector<32x4xf32>, vector<4x32xf32>, vector<32x32xf32> -> vector<32x32xf32>
    %163 = arith.addf %158, %162 : vector<32x32xf32>
    %164 = vector.extract_strided_slice %103 {offsets = [0, 1, 0], sizes = [4, 8, 4], strides = [1, 1, 1]} : vector<4x9x4xf32> to vector<4x8x4xf32>
    %165 = vector.shape_cast %164 : vector<4x8x4xf32> to vector<32x4xf32>
    %c5 = arith.constant 5 : index
    %c0_59 = arith.constant 0 : index
    %c0_60 = arith.constant 0 : index
    %166 = vector.load %arg6[%c5, %c0_59, %c0_60] : memref<9x4x32xf32, #tpu.memory_space<vmem>>, vector<1x4x32xf32>
    %167 = vector.shape_cast %166 : vector<1x4x32xf32> to vector<4x32xf32>
    %cst_61 = arith.constant dense<0.000000e+00> : vector<32x32xf32>
    %168 = tpu.matmul %165, %167, %cst_61 {dimension_numbers = #tpu.dot_dimension_numbers<[1], [0], [0], [1], [0, 0, 1, 1], [], []>} : vector<32x4xf32>, vector<4x32xf32>, vector<32x32xf32> -> vector<32x32xf32>
    %169 = arith.addf %163, %168 : vector<32x32xf32>
    %170 = vector.extract_strided_slice %88 {offsets = [1, 0, 0], sizes = [4, 8, 4], strides = [1, 1, 1]} : vector<5x9x4xf32> to vector<4x8x4xf32>
    %171 = vector.shape_cast %170 : vector<4x8x4xf32> to vector<32x4xf32>
    %c6 = arith.constant 6 : index
    %c0_62 = arith.constant 0 : index
    %c0_63 = arith.constant 0 : index
    %172 = vector.load %arg6[%c6, %c0_62, %c0_63] : memref<9x4x32xf32, #tpu.memory_space<vmem>>, vector<1x4x32xf32>
    %173 = vector.shape_cast %172 : vector<1x4x32xf32> to vector<4x32xf32>
    %cst_64 = arith.constant dense<0.000000e+00> : vector<32x32xf32>
    %174 = tpu.matmul %171, %173, %cst_64 {dimension_numbers = #tpu.dot_dimension_numbers<[1], [0], [0], [1], [0, 0, 1, 1], [], []>} : vector<32x4xf32>, vector<4x32xf32>, vector<32x32xf32> -> vector<32x32xf32>
    %175 = arith.addf %169, %174 : vector<32x32xf32>
    %176 = vector.extract_strided_slice %118 {offsets = [1, 0, 0], sizes = [4, 8, 4], strides = [1, 1, 1]} : vector<5x8x4xf32> to vector<4x8x4xf32>
    %177 = vector.shape_cast %176 : vector<4x8x4xf32> to vector<32x4xf32>
    %c7 = arith.constant 7 : index
    %c0_65 = arith.constant 0 : index
    %c0_66 = arith.constant 0 : index
    %178 = vector.load %arg6[%c7, %c0_65, %c0_66] : memref<9x4x32xf32, #tpu.memory_space<vmem>>, vector<1x4x32xf32>
    %179 = vector.shape_cast %178 : vector<1x4x32xf32> to vector<4x32xf32>
    %cst_67 = arith.constant dense<0.000000e+00> : vector<32x32xf32>
    %180 = tpu.matmul %177, %179, %cst_67 {dimension_numbers = #tpu.dot_dimension_numbers<[1], [0], [0], [1], [0, 0, 1, 1], [], []>} : vector<32x4xf32>, vector<4x32xf32>, vector<32x32xf32> -> vector<32x32xf32>
    %181 = arith.addf %175, %180 : vector<32x32xf32>
    %182 = vector.extract_strided_slice %88 {offsets = [1, 1, 0], sizes = [4, 8, 4], strides = [1, 1, 1]} : vector<5x9x4xf32> to vector<4x8x4xf32>
    %183 = vector.shape_cast %182 : vector<4x8x4xf32> to vector<32x4xf32>
    %c8 = arith.constant 8 : index
    %c0_68 = arith.constant 0 : index
    %c0_69 = arith.constant 0 : index
    %184 = vector.load %arg6[%c8, %c0_68, %c0_69] : memref<9x4x32xf32, #tpu.memory_space<vmem>>, vector<1x4x32xf32>
    %185 = vector.shape_cast %184 : vector<1x4x32xf32> to vector<4x32xf32>
    %cst_70 = arith.constant dense<0.000000e+00> : vector<32x32xf32>
    %186 = tpu.matmul %183, %185, %cst_70 {dimension_numbers = #tpu.dot_dimension_numbers<[1], [0], [0], [1], [0, 0, 1, 1], [], []>} : vector<32x4xf32>, vector<4x32xf32>, vector<32x32xf32> -> vector<32x32xf32>
    %187 = arith.addf %181, %186 : vector<32x32xf32>
    %c0_71 = arith.constant 0 : index
    %c0_72 = arith.constant 0 : index
    %188 = vector.load %arg7[%c0_71, %c0_72] : memref<1x32xf32, #tpu.memory_space<vmem>>, vector<1x32xf32>
    %189 = vector.broadcast %188 : vector<1x32xf32> to vector<32x32xf32>
    %190 = arith.addf %187, %189 : vector<32x32xf32>
    %c0_73 = arith.constant 0 : index
    %c0_74 = arith.constant 0 : index
    %c0_75 = arith.constant 0 : index
    %191 = vector.load %arg8[%c0_73, %c0_74, %c0_75] : memref<1x32x32xf32, #tpu.memory_space<vmem>>, vector<1x32x32xf32>
    %192 = vector.shape_cast %191 : vector<1x32x32xf32> to vector<32x32xf32>
    %193 = vector.shape_cast %190 : vector<32x32xf32> to vector<1x32x32xf32>
    tpu.vector_store %arg8[%c0_73, %c0_74, %c0_75], %193 {strides = array<i32>} : memref<1x32x32xf32, #tpu.memory_space<vmem>>, vector<1x32x32xf32>,
    return
  }
  func.func @transform_0(%arg0: i32, %arg1: i32) -> (i32, i32, i32, i32) {
    %c0_i32 = arith.constant 0 : i32
    %c0_i32_0 = arith.constant 0 : i32
    %c0_i32_1 = arith.constant 0 : i32
    %c0_i32_2 = arith.constant 0 : i32
    return %arg0, %c0_i32, %c0_i32_0, %c0_i32_1 : i32, i32, i32, i32
  }
  func.func @transform_1(%arg0: i32, %arg1: i32) -> (i32, i32, i32, i32) {
    %c0_i32 = arith.constant 0 : i32
    %c0_i32_0 = arith.constant 0 : i32
    %c0_i32_1 = arith.constant 0 : i32
    %c0_i32_2 = arith.constant 0 : i32
    return %arg0, %c0_i32, %c0_i32_0, %c0_i32_1 : i32, i32, i32, i32
  }
  func.func @transform_2(%arg0: i32, %arg1: i32) -> (i32, i32, i32, i32) {
    %c0_i32 = arith.constant 0 : i32
    %c0_i32_0 = arith.constant 0 : i32
    %c0_i32_1 = arith.constant 0 : i32
    %c0_i32_2 = arith.constant 0 : i32
    return %arg0, %c0_i32, %c0_i32_0, %c0_i32_1 : i32, i32, i32, i32
  }
  func.func @transform_3(%arg0: i32, %arg1: i32) -> (i32, i32, i32, i32) {
    %c0_i32 = arith.constant 0 : i32
    %c0_i32_0 = arith.constant 0 : i32
    %c0_i32_1 = arith.constant 0 : i32
    %c0_i32_2 = arith.constant 0 : i32
    return %arg0, %c0_i32, %c0_i32_0, %c0_i32_1 : i32, i32, i32, i32
  }
  func.func @transform_4(%arg0: i32, %arg1: i32) -> (i32, i32, i32) {
    %c0_i32 = arith.constant 0 : i32
    %c0_i32_0 = arith.constant 0 : i32
    %c0_i32_1 = arith.constant 0 : i32
    %c0_i32_2 = arith.constant 0 : i32
    return %c0_i32, %c0_i32_0, %c0_i32_1 : i32, i32, i32
  }
  func.func @transform_5(%arg0: i32, %arg1: i32) -> (i32, i32) {
    %c0_i32 = arith.constant 0 : i32
    %c0_i32_0 = arith.constant 0 : i32
    %c0_i32_1 = arith.constant 0 : i32
    return %c0_i32, %c0_i32_0 : i32, i32
  }
  func.func @transform_6(%arg0: i32, %arg1: i32) -> (i32, i32, i32) {
    %c0_i32 = arith.constant 0 : i32
    %c0_i32_0 = arith.constant 0 : i32
    return %arg0, %arg1, %c0_i32 : i32, i32, i32
  }
}

</mosaic_0001>

<llo_original>
// kernel: conv_downsample2d_forward.1
$region0: #{conv_downsample2d_forward.1}
  #allocation0 [shape = 'u32[]', space=smem, size = 0x4, offset = 0x4, fixed_abs, tag = 'smem constant byte address 0x4 - core index']
  #allocation1 [shape = 'u32[144,128]{1,0:T(1,128)}', space=vmem, size = 0x12000, scoped, tag = 'internal scratch']
  %s0 = inlined_call_operand.vmem [shape: f32[2,10,10,4], index: 0, kind: input, shape index: {}]
  %s1 = inlined_call_operand.vmem [shape: f32[2,10,10,4], index: 1, kind: input, shape index: {}]
  %s2 = inlined_call_operand.vmem [shape: f32[2,10,10,4], index: 2, kind: input, shape index: {}]
  %s3 = inlined_call_operand.vmem [shape: f32[2,10,10,4], index: 3, kind: input, shape index: {}]
  %s4 = inlined_call_operand.vmem [shape: f32[9,4,32], index: 4, kind: input, shape index: {}]
  %s5 = inlined_call_operand.vmem [shape: f32[1,32], index: 5, kind: input, shape index: {}]
  %s6 = inlined_call_operand.hbm [shape: f32[2,64,32], index: 6, kind: output, shape index: {}]
  %s7 = sld [smem:[#allocation0]]
  $region57: #{conv_downsample2d_forward.1} parent=0
    _
  %s9 = ssub.s32 1, %s7
  %s10 = scalar_select 0, %s9, %s7
  $region1: #{conv_downsample2d_forward.1} parent=0
    #allocation2 [shape = 'u8[32768]{0}', space=vmem, size = 0x8000, scoped, tag = 'output window, operand 0']
    #allocation3 [shape = 's32[2]{0}', space=sflag, size = 0x8, scoped, tag = 'scoped memory for conv_downsample2d_forward.1']
    %11 = vsyncpa [#allocation3], 0
    %s12 = scalar_lea.sflag [#allocation3], 1
    %13 = vsyncpa %s12, 0
    loop: start=0, step=1, limit=6
    $region2: #{conv_downsample2d_forward.1} parent=1 // loop_pre_header
      _
    $region3: #{conv_downsample2d_forward.1} parent=1 // loop_header
      %s15 = sphi 0, %s19
      %p16 = scmp.ge.s32.totalorder %s15, 6
      %s22 = sphi 0, %s34
      %s23 = sphi 0, %s30
      %s24 = sphi 0, %s22
      %s25 = sphi 0, %s23
      %s26 = sphi 0, %s24
      %s27 = sphi 0, %s25
      %s37 = sphi 0, %s39
      %s40 = sphi 0, %s37
      %s41 = sphi 0, %s40
      %s57 = sphi 0, %s41
      %s63 = sphi 0, %s65
      %s66 = sphi 0, %s63
      %s67 = sphi 0, %s66
      %s83 = sphi 0, %s67
      %s89 = sphi 0, %s91
      %s92 = sphi 0, %s89
      %s93 = sphi 0, %s92
      %s109 = sphi 0, %s93
      %s115 = sphi 0, %s117
      %s118 = sphi 0, %s115
      %s119 = sphi 0, %s118
      %s135 = sphi 0, %s119
      %s139 = sphi 0, %s139
      %s141 = sphi 0, %s139
      %s142 = sphi 0, %s141
      %s156 = sphi 0, %s142
      %s160 = sphi 0, %s160
      %s162 = sphi 0, %s160
      %s163 = sphi 0, %s162
      %s177 = sphi 0, %s163
      %s185 = sphi 0, %s187
      %s188 = sphi 0, %s185
      %s189 = sphi 0, %s188
      %s205 = sphi 0, %s189
    $region4: #{conv_downsample2d_forward.1} parent=1 // loop_header_branch
      %18 = sbr.rel (%p16) target = $region8
    $region5: #{conv_downsample2d_forward.1} parent=1 // loop_body
      %s20 = ssub.s32 %s15, 1
      %s21 = ssub.s32 %s15, 2
      %s28 = sadd.s32 1, %s23
      %p29 = scmp.ge.s32.totalorder %s28, 2
      %s30 = scalar_select %p29, 0, %s28
      %s31 = sadd.s32 1, %s22
      %s32 = scalar_select %p29, %s31, %s22
      %p33 = scmp.ge.s32.totalorder %s32, 2
      %s34 = scalar_select %p33, 0, %s32
      %s35 = ssub.s32 %s22, %s34
      %p36 = scmp.eq.s32.totalorder %s35, 0
      %s38 = sadd.s32 %s37, 1
      %s39 = scalar_select %p36, %s37, %s38
      %p42 = pneg %p36
      %p43 = scmp.eq.s32.totalorder %s15, 3
      %p44 = por %p42, %p43
      %p45 = scmp.ne.s32.totalorder %s37, %s40
      %p46 = scmp.eq.s32.totalorder %s15, 0
      %p47 = por %p45, %p46
      %p48 = scmp.ne.s32.totalorder %s37, %s40
      %p49 = scmp.eq.s32.totalorder %s20, 3
      %p50 = por %p48, %p49
      %p51 = scmp.ne.s32.totalorder %s40, %s41
      %p52 = scmp.eq.s32.totalorder %s20, 0
      %p53 = por %p51, %p52
      %p54 = scmp.ne.s32.totalorder %s40, %s41
      %p55 = scmp.eq.s32.totalorder %s21, 3
      %p56 = por %p54, %p55
      %p58 = scmp.ne.s32.totalorder %s41, %s57
      %p59 = scmp.eq.s32.totalorder %s21, 0
      %p60 = por %p58, %p59
      %s61 = ssub.s32 %s22, %s34
      %p62 = scmp.eq.s32.totalorder %s61, 0
      %s64 = sadd.s32 %s63, 1
      %s65 = scalar_select %p62, %s63, %s64
      %p68 = pneg %p62
      %p69 = scmp.eq.s32.totalorder %s15, 3
      %p70 = por %p68, %p69
      %p71 = scmp.ne.s32.totalorder %s63, %s66
      %p72 = scmp.eq.s32.totalorder %s15, 0
      %p73 = por %p71, %p72
      %p74 = scmp.ne.s32.totalorder %s63, %s66
      %p75 = scmp.eq.s32.totalorder %s20, 3
      %p76 = por %p74, %p75
      %p77 = scmp.ne.s32.totalorder %s66, %s67
      %p78 = scmp.eq.s32.totalorder %s20, 0
      %p79 = por %p77, %p78
      %p80 = scmp.ne.s32.totalorder %s66, %s67
      %p81 = scmp.eq.s32.totalorder %s21, 3
      %p82 = por %p80, %p81
      %p84 = scmp.ne.s32.totalorder %s67, %s83
      %p85 = scmp.eq.s32.totalorder %s21, 0
      %p86 = por %p84, %p85
      %s87 = ssub.s32 %s22, %s34
      %p88 = scmp.eq.s32.totalorder %s87, 0
      %s90 = sadd.s32 %s89, 1
      %s91 = scalar_select %p88, %s89, %s90
      %p94 = pneg %p88
      %p95 = scmp.eq.s32.totalorder %s15, 3
      %p96 = por %p94, %p95
      %p97 = scmp.ne.s32.totalorder %s89, %s92
      %p98 = scmp.eq.s32.totalorder %s15, 0
      %p99 = por %p97, %p98
      %p100 = scmp.ne.s32.totalorder %s89, %s92
      %p101 = scmp.eq.s32.totalorder %s20, 3
      %p102 = por %p100, %p101
      %p103 = scmp.ne.s32.totalorder %s92, %s93
      %p104 = scmp.eq.s32.totalorder %s20, 0
      %p105 = por %p103, %p104
      %p106 = scmp.ne.s32.totalorder %s92, %s93
      %p107 = scmp.eq.s32.totalorder %s21, 3
      %p108 = por %p106, %p107
      %p110 = scmp.ne.s32.totalorder %s93, %s109
      %p111 = scmp.eq.s32.totalorder %s21, 0
      %p112 = por %p110, %p111
      %s113 = ssub.s32 %s22, %s34
      %p114 = scmp.eq.s32.totalorder %s113, 0
      %s116 = sadd.s32 %s115, 1
      %s117 = scalar_select %p114, %s115, %s116
      %p120 = pneg %p114
      %p121 = scmp.eq.s32.totalorder %s15, 3
      %p122 = por %p120, %p121
      %p123 = scmp.ne.s32.totalorder %s115, %s118
      %p124 = scmp.eq.s32.totalorder %s15, 0
      %p125 = por %p123, %p124
      %p126 = scmp.ne.s32.totalorder %s115, %s118
      %p127 = scmp.eq.s32.totalorder %s20, 3
      %p128 = por %p126, %p127
      %p129 = scmp.ne.s32.totalorder %s118, %s119
      %p130 = scmp.eq.s32.totalorder %s20, 0
      %p131 = por %p129, %p130
      %p132 = scmp.ne.s32.totalorder %s118, %s119
      %p133 = scmp.eq.s32.totalorder %s21, 3
      %p134 = por %p132, %p133
      %p136 = scmp.ne.s32.totalorder %s119, %s135
      %p137 = scmp.eq.s32.totalorder %s21, 0
      %p138 = por %p136, %p137
      %s140 = sadd.s32 %s139, 1
      %p143 = scmp.eq.s32.totalorder %s15, 3
      %p144 = scmp.ne.s32.totalorder %s139, %s141
      %p145 = scmp.eq.s32.totalorder %s15, 0
      %p146 = por %p144, %p145
      %p147 = scmp.ne.s32.totalorder %s139, %s141
      %p148 = scmp.eq.s32.totalorder %s20, 3
      %p149 = por %p147, %p148
      %p150 = scmp.ne.s32.totalorder %s141, %s142
      %p151 = scmp.eq.s32.totalorder %s20, 0
      %p152 = por %p150, %p151
      %p153 = scmp.ne.s32.totalorder %s141, %s142
      %p154 = scmp.eq.s32.totalorder %s21, 3
      %p155 = por %p153, %p154
      %p157 = scmp.ne.s32.totalorder %s142, %s156
      %p158 = scmp.eq.s32.totalorder %s21, 0
      %p159 = por %p157, %p158
      %s161 = sadd.s32 %s160, 1
      %p164 = scmp.eq.s32.totalorder %s15, 3
      %p165 = scmp.ne.s32.totalorder %s160, %s162
      %p166 = scmp.eq.s32.totalorder %s15, 0
      %p167 = por %p165, %p166
      %p168 = scmp.ne.s32.totalorder %s160, %s162
      %p169 = scmp.eq.s32.totalorder %s20, 3
      %p170 = por %p168, %p169
      %p171 = scmp.ne.s32.totalorder %s162, %s163
      %p172 = scmp.eq.s32.totalorder %s20, 0
      %p173 = por %p171, %p172
      %p174 = scmp.ne.s32.totalorder %s162, %s163
      %p175 = scmp.eq.s32.totalorder %s21, 3
      %p176 = por %p174, %p175
      %p178 = scmp.ne.s32.totalorder %s163, %s177
      %p179 = scmp.eq.s32.totalorder %s21, 0
      %p180 = por %p178, %p179
      %s181 = ssub.s32 %s22, %s34
      %s182 = ssub.s32 %s23, %s30
      %s183 = sor.u32 %s181, %s182
      %p184 = scmp.eq.s32.totalorder %s183, 0
      %s186 = sadd.s32 %s185, 1
      %s187 = scalar_select %p184, %s185, %s186
      %p190 = pneg %p184
      %p191 = scmp.eq.s32.totalorder %s15, 3
      %p192 = por %p190, %p191
      %p193 = scmp.ne.s32.totalorder %s185, %s188
      %p194 = scmp.eq.s32.totalorder %s15, 0
      %p195 = por %p193, %p194
      %p196 = scmp.ne.s32.totalorder %s185, %s188
      %p197 = scmp.eq.s32.totalorder %s20, 3
      %p198 = por %p196, %p197
      %p199 = scmp.ne.s32.totalorder %s188, %s189
      %p200 = scmp.eq.s32.totalorder %s20, 0
      %p201 = por %p199, %p200
      %p202 = scmp.ne.s32.totalorder %s188, %s189
      %p203 = scmp.eq.s32.totalorder %s21, 3
      %p204 = por %p202, %p203
      %p206 = scmp.ne.s32.totalorder %s189, %s205
      %p207 = scmp.eq.s32.totalorder %s21, 0
      %p208 = por %p206, %p207
      %p209 = scmp.le.s32.totalorder 1, %s15
      %p210 = scmp.lt.s32.totalorder %s15, 5
      %p211 = pnand %p209, %p210
      %p212 = pneg %p211
      // Predicated region
      $region9: #{conv_downsample2d_forward.1} parent=5 // pred_check
        _
      $region10: #{conv_downsample2d_forward.1} parent=5 // pred_check_branch
        %214 = sbr.rel (%p211) target = $region12
      $region11: #{conv_downsample2d_forward.1} parent=5 // pred_region
        %s215 = ssub.s32 %s15, 1
        // Predicated region
        $region13: #{conv_downsample2d_forward.1} parent=11 // pred_check
          %p216 = pneg %p152
        $region14: #{conv_downsample2d_forward.1} parent=11 // pred_check_branch
          %218 = sbr.rel (%p216) target = $region16
        $region15: #{conv_downsample2d_forward.1} parent=11 // pred_region
          _
        $region16: #{conv_downsample2d_forward.1} parent=11 // pred_fallthru
          _
        // Predicated region
        $region17: #{conv_downsample2d_forward.1} parent=11 // pred_check
          %p219 = pneg %p173
        $region18: #{conv_downsample2d_forward.1} parent=11 // pred_check_branch
          %221 = sbr.rel (%p219) target = $region20
        $region19: #{conv_downsample2d_forward.1} parent=11 // pred_region
          _
        $region20: #{conv_downsample2d_forward.1} parent=11 // pred_fallthru
          _
      $region12: #{conv_downsample2d_forward.1} parent=5 // pred_fallthru
        _
      %p222 = scmp.lt.s32.totalorder %s15, 4
      // Predicated region
      $region21: #{conv_downsample2d_forward.1} parent=5 // pred_check
        %p223 = pneg %p222
      $region22: #{conv_downsample2d_forward.1} parent=5 // pred_check_branch
        %225 = sbr.rel (%p223) target = $region24
      $region23: #{conv_downsample2d_forward.1} parent=5 // pred_region
        // Predicated region
        $region25: #{conv_downsample2d_forward.1} parent=23 // pred_check
          %p226 = pneg %p47
        $region26: #{conv_downsample2d_forward.1} parent=23 // pred_check_branch
          %228 = sbr.rel (%p226) target = $region28
        $region27: #{conv_downsample2d_forward.1} parent=23 // pred_region
          %p229 = scmp.lt.s32.totalorder %s22, 1
          %s230 = scalar_select %p229, %s22, 1
          %s231 = smul.addr %s230, 20
          %s232 = smul.addr %s231, 8
          %s233 = scalar_lea.vmem %s0, %s232
        $region28: #{conv_downsample2d_forward.1} parent=23 // pred_fallthru
          _
        // Predicated region
        $region29: #{conv_downsample2d_forward.1} parent=23 // pred_check
          %p234 = pneg %p73
        $region30: #{conv_downsample2d_forward.1} parent=23 // pred_check_branch
          %236 = sbr.rel (%p234) target = $region32
        $region31: #{conv_downsample2d_forward.1} parent=23 // pred_region
          %p237 = scmp.lt.s32.totalorder %s22, 1
          %s238 = scalar_select %p237, %s22, 1
          %s239 = smul.addr %s238, 20
          %s240 = smul.addr %s239, 8
          %s241 = scalar_lea.vmem %s1, %s240
        $region32: #{conv_downsample2d_forward.1} parent=23 // pred_fallthru
          _
        // Predicated region
        $region33: #{conv_downsample2d_forward.1} parent=23 // pred_check
          %p242 = pneg %p99
        $region34: #{conv_downsample2d_forward.1} parent=23 // pred_check_branch
          %244 = sbr.rel (%p242) target = $region36
        $region35: #{conv_downsample2d_forward.1} parent=23 // pred_region
          %p245 = scmp.lt.s32.totalorder %s22, 1
          %s246 = scalar_select %p245, %s22, 1
          %s247 = smul.addr %s246, 20
          %s248 = smul.addr %s247, 8
          %s249 = scalar_lea.vmem %s2, %s248
        $region36: #{conv_downsample2d_forward.1} parent=23 // pred_fallthru
          _
        // Predicated region
        $region37: #{conv_downsample2d_forward.1} parent=23 // pred_check
          %p250 = pneg %p125
        $region38: #{conv_downsample2d_forward.1} parent=23 // pred_check_branch
          %252 = sbr.rel (%p250) target = $region40
        $region39: #{conv_downsample2d_forward.1} parent=23 // pred_region
          %p253 = scmp.lt.s32.totalorder %s22, 1
          %s254 = scalar_select %p253, %s22, 1
          %s255 = smul.addr %s254, 20
          %s256 = smul.addr %s255, 8
          %s257 = scalar_lea.vmem %s3, %s256
        $region40: #{conv_downsample2d_forward.1} parent=23 // pred_fallthru
          _
      $region24: #{conv_downsample2d_forward.1} parent=5 // pred_fallthru
        _
      %p258 = scmp.le.s32.totalorder 1, %s15
      %p259 = scmp.lt.s32.totalorder %s15, 5
      %p260 = pnand %p258, %p259
      %p261 = pneg %p260
      // Predicated region
      $region41: #{conv_downsample2d_forward.1} parent=5 // pred_check
        _
      $region42: #{conv_downsample2d_forward.1} parent=5 // pred_check_branch
        %263 = sbr.rel (%p260) target = $region44
      $region43: #{conv_downsample2d_forward.1} parent=5 // pred_region
        %s264 = ssub.s32 %s15, 1
        %p265 = scmp.lt.s32.totalorder %s24, 1
        %s266 = scalar_select %p265, %s24, 1
        %s267 = smul.addr %s266, 20
        %s268 = smul.addr %s267, 8
        %s269 = scalar_lea.vmem %s0, %s268
        %p270 = pneg %p53
        %p271 = pneg %p50
        %p272 = scmp.lt.s32.totalorder %s24, 1
        %s273 = scalar_select %p272, %s24, 1
        %s274 = smul.addr %s273, 20
        %s275 = smul.addr %s274, 8
        %s276 = scalar_lea.vmem %s1, %s275
        %p277 = pneg %p79
        %p278 = pneg %p76
        %p279 = scmp.lt.s32.totalorder %s24, 1
        %s280 = scalar_select %p279, %s24, 1
        %s281 = smul.addr %s280, 20
        %s282 = smul.addr %s281, 8
        %s283 = scalar_lea.vmem %s2, %s282
        %p284 = pneg %p105
        %p285 = pneg %p102
        %p286 = scmp.lt.s32.totalorder %s24, 1
        %s287 = scalar_select %p286, %s24, 1
        %s288 = smul.addr %s287, 20
        %s289 = smul.addr %s288, 8
        %s290 = scalar_lea.vmem %s3, %s289
        %p291 = pneg %p131
        %p292 = pneg %p128
        %p293 = pneg %p152
        %p294 = pneg %p149
        %p295 = pneg %p173
        %p296 = pneg %p170
        %p297 = pneg %p201
        %p298 = pneg %p198
        %s299 = sand.u32 %s188, 1
        %s300 = scalar_lea.sflag [#allocation3], %s299
        %s301 = sand.u32 %s188, 1
        %s302 = smul.addr %s301, 32
        %s303 = scalar_lea.vmem [#allocation2], %s302
        %p304 = scmp.lt.s32.totalorder %s24, 1
        %s305 = scalar_select %p304, %s24, 1
        %s306 = smul.addr %s305, 20
        %s307 = smul.addr %s306, 8
        %s308 = scalar_lea.vmem %s0, %s307
        %p309 = scmp.lt.s32.totalorder %s24, 1
        %s310 = scalar_select %p309, %s24, 1
        %s311 = smul.addr %s310, 20
        %s312 = smul.addr %s311, 8
        %s313 = scalar_lea.vmem %s1, %s312
        %p314 = scmp.lt.s32.totalorder %s24, 1
        %s315 = scalar_select %p314, %s24, 1
        %s316 = smul.addr %s315, 20
        %s317 = smul.addr %s316, 8
        %s318 = scalar_lea.vmem %s2, %s317
        %p319 = scmp.lt.s32.totalorder %s24, 1
        %s320 = scalar_select %p319, %s24, 1
        %s321 = smul.addr %s320, 20
        %s322 = smul.addr %s321, 8
        %s323 = scalar_lea.vmem %s3, %s322
        %s324 = smul.u32 4, %s25
        %s325 = smul.u32 %s25, 4
        %s326 = smul.u32 %s325, 16
        %s327 = scalar_lea.vmem %s308, %s326
        %v328 = vld [vmem:[%s327] sm:$0xff]
        %v329 = vld [vmem:[%s327 + $0x8] sm:$0x3]
        %v330 = vld [vmem:[%s327 + $0x10] sm:$0xff]
        %v331 = vld [vmem:[%s327 + $0x18] sm:$0x3]
        %v332 = vld [vmem:[%s327 + $0x20] sm:$0xff]
        %v333 = vld [vmem:[%s327 + $0x28] sm:$0x3]
        %v334 = vld [vmem:[%s327 + $0x30] sm:$0xff]
        %v335 = vld [vmem:[%s327 + $0x38] sm:$0x3]
        %v336 = vld [vmem:[%s327 + $0x40] sm:$0xff]
        %v337 = vld [vmem:[%s327 + $0x48] sm:$0x3]
        %v338 = vld [vmem:[%s327 + $0x50] sm:$0xff]
        %v339 = vld [vmem:[%s327 + $0x58] sm:$0x3]
        %s340 = scalar_lea.vmem %s313, %s326
        %v341 = vld [vmem:[%s340] sm:$0xff]
        %v342 = vld [vmem:[%s340 + $0x8] sm:$0x3]
        %v343 = vld [vmem:[%s340 + $0x10] sm:$0xff]
        %v344 = vld [vmem:[%s340 + $0x18] sm:$0x3]
        %v345 = vld [vmem:[%s340 + $0x20] sm:$0xff]
        %v346 = vld [vmem:[%s340 + $0x28] sm:$0x3]
        %v347 = vld [vmem:[%s340 + $0x30] sm:$0xff]
        %v348 = vld [vmem:[%s340 + $0x38] sm:$0x3]
        %v349 = vld [vmem:[%s340 + $0x40] sm:$0xff]
        %v350 = vld [vmem:[%s340 + $0x48] sm:$0x3]
        %v351 = vld [vmem:[%s340 + $0x50] sm:$0xff]
        %v352 = vld [vmem:[%s340 + $0x58] sm:$0x3]
        %s353 = scalar_lea.vmem %s318, %s326
        %v354 = vld [vmem:[%s353] sm:$0xff]
        %v355 = vld [vmem:[%s353 + $0x8] sm:$0x3]
        %v356 = vld [vmem:[%s353 + $0x10] sm:$0xff]
        %v357 = vld [vmem:[%s353 + $0x18] sm:$0x3]
        %v358 = vld [vmem:[%s353 + $0x20] sm:$0xff]
        %v359 = vld [vmem:[%s353 + $0x28] sm:$0x3]
        %v360 = vld [vmem:[%s353 + $0x30] sm:$0xff]
        %v361 = vld [vmem:[%s353 + $0x38] sm:$0x3]
        %v362 = vld [vmem:[%s353 + $0x40] sm:$0xff]
        %v363 = vld [vmem:[%s353 + $0x48] sm:$0x3]
        %v364 = vld [vmem:[%s353 + $0x50] sm:$0xff]
        %v365 = vld [vmem:[%s353 + $0x58] sm:$0x3]
        %s366 = scalar_lea.vmem %s323, %s326
        %v367 = vld [vmem:[%s366] sm:$0xff]
        %v368 = vld [vmem:[%s366 + $0x8] sm:$0x3]
        %v369 = vld [vmem:[%s366 + $0x10] sm:$0xff]
        %v370 = vld [vmem:[%s366 + $0x18] sm:$0x3]
        %v371 = vld [vmem:[%s366 + $0x20] sm:$0xff]
        %v372 = vld [vmem:[%s366 + $0x28] sm:$0x3]
        %v373 = vld [vmem:[%s366 + $0x30] sm:$0xff]
        %v374 = vld [vmem:[%s366 + $0x38] sm:$0x3]
        %v375 = vld [vmem:[%s366 + $0x40] sm:$0xff]
        %v376 = vld [vmem:[%s366 + $0x48] sm:$0x3]
        %v377 = vld [vmem:[%s366 + $0x50] sm:$0xff]
        %v378 = vld [vmem:[%s366 + $0x58] sm:$0x3]
        %v379 = vmul.f32 %v328, 0.125
        %v380 = vmul.f32 %v329, 0.125
        %v381 = vmul.f32 %v330, 0.125
        %v382 = vmul.f32 %v331, 0.125
        %v383 = vmul.f32 %v332, 0.125
        %v384 = vmul.f32 %v333, 0.125
        %v385 = vmul.f32 %v334, 0.125
        %v386 = vmul.f32 %v335, 0.125
        %v387 = vmul.f32 %v336, 0.125
        %v388 = vmul.f32 %v337, 0.125
        %v389 = vmul.f32 %v338, 0.125
        %v390 = vmul.f32 %v339, 0.125
        %v391 = vmul.f32 %v341, 0.375
        %v392 = vmul.f32 %v342, 0.375
        %v393 = vmul.f32 %v343, 0.375
        %v394 = vmul.f32 %v344, 0.375
        %v395 = vmul.f32 %v345, 0.375
        %v396 = vmul.f32 %v346, 0.375
        %v397 = vmul.f32 %v347, 0.375
        %v398 = vmul.f32 %v348, 0.375
        %v399 = vmul.f32 %v349, 0.375
        %v400 = vmul.f32 %v350, 0.375
        %v401 = vmul.f32 %v351, 0.375
        %v402 = vmul.f32 %v352, 0.375
        %v403 = vadd.f32 %v379, %v391
        %v404 = vadd.f32 %v380, %v392
        %v405 = vadd.f32 %v381, %v393
        %v406 = vadd.f32 %v382, %v394
        %v407 = vadd.f32 %v383, %v395
        %v408 = vadd.f32 %v384, %v396
        %v409 = vadd.f32 %v385, %v397
        %v410 = vadd.f32 %v386, %v398
        %v411 = vadd.f32 %v387, %v399
        %v412 = vadd.f32 %v388, %v400
        %v413 = vadd.f32 %v389, %v401
        %v414 = vadd.f32 %v390, %v402
        %v415 = vmul.f32 %v328, 0.375
        %v416 = vmul.f32 %v329, 0.375
        %v417 = vmul.f32 %v330, 0.375
        %v418 = vmul.f32 %v331, 0.375
        %v419 = vmul.f32 %v332, 0.375
        %v420 = vmul.f32 %v333, 0.375
        %v421 = vmul.f32 %v334, 0.375
        %v422 = vmul.f32 %v335, 0.375
        %v423 = vmul.f32 %v336, 0.375
        %v424 = vmul.f32 %v337, 0.375
        %v425 = vmul.f32 %v338, 0.375
        %v426 = vmul.f32 %v339, 0.375
        %vm439 = vcmask 1046528
        %v440 = vrot.slane %v415, 1
        %v441 = vrot.slane %v416, 1
        %v442 = vsel %vm439, %v440, %v441
        %v443 = vrot.slane %v417, 1
        %v444 = vrot.slane %v418, 1
        %v445 = vsel %vm439, %v443, %v444
        %v446 = vrot.slane %v419, 1
        %v447 = vrot.slane %v420, 1
        %v448 = vsel %vm439, %v446, %v447
        %v449 = vrot.slane %v421, 1
        %v450 = vrot.slane %v422, 1
        %v451 = vsel %vm439, %v449, %v450
        %v452 = vrot.slane %v423, 1
        %v453 = vrot.slane %v424, 1
        %v454 = vsel %vm439, %v452, %v453
        %v455 = vrot.slane %v425, 1
        %v456 = vrot.slane %v426, 1
        %v457 = vsel %vm439, %v455, %v456
        %v470 = vadd.f32 %v403, %v442
        %v471 = vadd.f32 %v404, %v441
        %v472 = vadd.f32 %v405, %v445
        %v473 = vadd.f32 %v406, %v444
        %v474 = vadd.f32 %v407, %v448
        %v475 = vadd.f32 %v408, %v447
        %v476 = vadd.f32 %v409, %v451
        %v477 = vadd.f32 %v410, %v450
        %v478 = vadd.f32 %v411, %v454
        %v479 = vadd.f32 %v412, %v453
        %v480 = vadd.f32 %v413, %v457
        %v481 = vadd.f32 %v414, %v456
        %v482 = vmul.f32 %v341, 0.125
        %v483 = vmul.f32 %v342, 0.125
        %v484 = vmul.f32 %v343, 0.125
        %v485 = vmul.f32 %v344, 0.125
        %v486 = vmul.f32 %v345, 0.125
        %v487 = vmul.f32 %v346, 0.125
        %v488 = vmul.f32 %v347, 0.125
        %v489 = vmul.f32 %v348, 0.125
        %v490 = vmul.f32 %v349, 0.125
        %v491 = vmul.f32 %v350, 0.125
        %v492 = vmul.f32 %v351, 0.125
        %v493 = vmul.f32 %v352, 0.125
        %v506 = vrot.slane %v482, 1
        %v507 = vrot.slane %v483, 1
        %v508 = vsel %vm439, %v506, %v507
        %v509 = vrot.slane %v484, 1
        %v510 = vrot.slane %v485, 1
        %v511 = vsel %vm439, %v509, %v510
        %v512 = vrot.slane %v486, 1
        %v513 = vrot.slane %v487, 1
        %v514 = vsel %vm439, %v512, %v513
        %v515 = vrot.slane %v488, 1
        %v516 = vrot.slane %v489, 1
        %v517 = vsel %vm439, %v515, %v516
        %v518 = vrot.slane %v490, 1
        %v519 = vrot.slane %v491, 1
        %v520 = vsel %vm439, %v518, %v519
        %v521 = vrot.slane %v492, 1
        %v522 = vrot.slane %v493, 1
        %v523 = vsel %vm439, %v521, %v522
        %v536 = vadd.f32 %v470, %v508
        %v537 = vadd.f32 %v471, %v507
        %v538 = vadd.f32 %v472, %v511
        %v539 = vadd.f32 %v473, %v510
        %v540 = vadd.f32 %v474, %v514
        %v541 = vadd.f32 %v475, %v513
        %v542 = vadd.f32 %v476, %v517
        %v543 = vadd.f32 %v477, %v516
        %v544 = vadd.f32 %v478, %v520
        %v545 = vadd.f32 %v479, %v519
        %v546 = vadd.f32 %v480, %v523
        %v547 = vadd.f32 %v481, %v522
        %v548 = vadd.f32 %v482, %v442
        %v549 = vadd.f32 %v484, %v445
        %v550 = vadd.f32 %v486, %v448
        %v551 = vadd.f32 %v488, %v451
        %v552 = vadd.f32 %v490, %v454
        %v553 = vadd.f32 %v492, %v457
        %v566 = vrot.slane %v391, 1
        %v567 = vrot.slane %v392, 1
        %v568 = vsel %vm439, %v566, %v567
        %v569 = vrot.slane %v393, 1
        %v570 = vrot.slane %v394, 1
        %v571 = vsel %vm439, %v569, %v570
        %v572 = vrot.slane %v395, 1
        %v573 = vrot.slane %v396, 1
        %v574 = vsel %vm439, %v572, %v573
        %v575 = vrot.slane %v397, 1
        %v576 = vrot.slane %v398, 1
        %v577 = vsel %vm439, %v575, %v576
        %v578 = vrot.slane %v399, 1
        %v579 = vrot.slane %v400, 1
        %v580 = vsel %vm439, %v578, %v579
        %v581 = vrot.slane %v401, 1
        %v582 = vrot.slane %v402, 1
        %v583 = vsel %vm439, %v581, %v582
        %v590 = vadd.f32 %v548, %v568
        %v591 = vadd.f32 %v549, %v571
        %v592 = vadd.f32 %v550, %v574
        %v593 = vadd.f32 %v551, %v577
        %v594 = vadd.f32 %v552, %v580
        %v595 = vadd.f32 %v553, %v583
        %vm608 = vcmask 1045504
        %v609 = vrot.slane %v379, 2
        %v610 = vrot.slane %v380, 2
        %v611 = vsel %vm608, %v609, %v610
        %v612 = vrot.slane %v381, 2
        %v613 = vrot.slane %v382, 2
        %v614 = vsel %vm608, %v612, %v613
        %v615 = vrot.slane %v383, 2
        %v616 = vrot.slane %v384, 2
        %v617 = vsel %vm608, %v615, %v616
        %v618 = vrot.slane %v385, 2
        %v619 = vrot.slane %v386, 2
        %v620 = vsel %vm608, %v618, %v619
        %v621 = vrot.slane %v387, 2
        %v622 = vrot.slane %v388, 2
        %v623 = vsel %vm608, %v621, %v622
        %v624 = vrot.slane %v389, 2
        %v625 = vrot.slane %v390, 2
        %v626 = vsel %vm608, %v624, %v625
        %v633 = vadd.f32 %v590, %v611
        %v634 = vadd.f32 %v591, %v614
        %v635 = vadd.f32 %v592, %v617
        %v636 = vadd.f32 %v593, %v620
        %v637 = vadd.f32 %v594, %v623
        %v638 = vadd.f32 %v595, %v626
        %v639 = vmul.f32 %v354, 0.125
        %v640 = vmul.f32 %v355, 0.125
        %v641 = vmul.f32 %v356, 0.125
        %v642 = vmul.f32 %v357, 0.125
        %v643 = vmul.f32 %v358, 0.125
        %v644 = vmul.f32 %v359, 0.125
        %v645 = vmul.f32 %v360, 0.125
        %v646 = vmul.f32 %v361, 0.125
        %v647 = vmul.f32 %v362, 0.125
        %v648 = vmul.f32 %v363, 0.125
        %v649 = vmul.f32 %v364, 0.125
        %v650 = vmul.f32 %v365, 0.125
        %v651 = vmul.f32 %v367, 0.375
        %v652 = vmul.f32 %v368, 0.375
        %v653 = vmul.f32 %v369, 0.375
        %v654 = vmul.f32 %v370, 0.375
        %v655 = vmul.f32 %v371, 0.375
        %v656 = vmul.f32 %v372, 0.375
        %v657 = vmul.f32 %v373, 0.375
        %v658 = vmul.f32 %v374, 0.375
        %v659 = vmul.f32 %v375, 0.375
        %v660 = vmul.f32 %v376, 0.375
        %v661 = vmul.f32 %v377, 0.375
        %v662 = vmul.f32 %v378, 0.375
        %v663 = vadd.f32 %v639, %v651
        %v664 = vadd.f32 %v640, %v652
        %v665 = vadd.f32 %v641, %v653
        %v666 = vadd.f32 %v642, %v654
        %v667 = vadd.f32 %v643, %v655
        %v668 = vadd.f32 %v644, %v656
        %v669 = vadd.f32 %v645, %v657
        %v670 = vadd.f32 %v646, %v658
        %v671 = vadd.f32 %v647, %v659
        %v672 = vadd.f32 %v648, %v660
        %v673 = vadd.f32 %v649, %v661
        %v674 = vadd.f32 %v650, %v662
        %v675 = vmul.f32 %v354, 0.375
        %v676 = vmul.f32 %v355, 0.375
        %v677 = vmul.f32 %v356, 0.375
        %v678 = vmul.f32 %v357, 0.375
        %v679 = vmul.f32 %v358, 0.375
        %v680 = vmul.f32 %v359, 0.375
        %v681 = vmul.f32 %v360, 0.375
        %v682 = vmul.f32 %v361, 0.375
        %v683 = vmul.f32 %v362, 0.375
        %v684 = vmul.f32 %v363, 0.375
        %v685 = vmul.f32 %v364, 0.375
        %v686 = vmul.f32 %v365, 0.375
        %v699 = vrot.slane %v675, 1
        %v700 = vrot.slane %v676, 1
        %v701 = vsel %vm439, %v699, %v700
        %v702 = vrot.slane %v677, 1
        %v703 = vrot.slane %v678, 1
        %v704 = vsel %vm439, %v702, %v703
        %v705 = vrot.slane %v679, 1
        %v706 = vrot.slane %v680, 1
        %v707 = vsel %vm439, %v705, %v706
        %v708 = vrot.slane %v681, 1
        %v709 = vrot.slane %v682, 1
        %v710 = vsel %vm439, %v708, %v709
        %v711 = vrot.slane %v683, 1
        %v712 = vrot.slane %v684, 1
        %v713 = vsel %vm439, %v711, %v712
        %v714 = vrot.slane %v685, 1
        %v715 = vrot.slane %v686, 1
        %v716 = vsel %vm439, %v714, %v715
        %v729 = vadd.f32 %v663, %v701
        %v730 = vadd.f32 %v664, %v700
        %v731 = vadd.f32 %v665, %v704
        %v732 = vadd.f32 %v666, %v703
        %v733 = vadd.f32 %v667, %v707
        %v734 = vadd.f32 %v668, %v706
        %v735 = vadd.f32 %v669, %v710
        %v736 = vadd.f32 %v670, %v709
        %v737 = vadd.f32 %v671, %v713
        %v738 = vadd.f32 %v672, %v712
        %v739 = vadd.f32 %v673, %v716
        %v740 = vadd.f32 %v674, %v715
        %v741 = vmul.f32 %v367, 0.125
        %v742 = vmul.f32 %v368, 0.125
        %v743 = vmul.f32 %v369, 0.125
        %v744 = vmul.f32 %v370, 0.125
        %v745 = vmul.f32 %v371, 0.125
        %v746 = vmul.f32 %v372, 0.125
        %v747 = vmul.f32 %v373, 0.125
        %v748 = vmul.f32 %v374, 0.125
        %v749 = vmul.f32 %v375, 0.125
        %v750 = vmul.f32 %v376, 0.125
        %v751 = vmul.f32 %v377, 0.125
        %v752 = vmul.f32 %v378, 0.125
        %v765 = vrot.slane %v741, 1
        %v766 = vrot.slane %v742, 1
        %v767 = vsel %vm439, %v765, %v766
        %v768 = vrot.slane %v743, 1
        %v769 = vrot.slane %v744, 1
        %v770 = vsel %vm439, %v768, %v769
        %v771 = vrot.slane %v745, 1
        %v772 = vrot.slane %v746, 1
        %v773 = vsel %vm439, %v771, %v772
        %v774 = vrot.slane %v747, 1
        %v775 = vrot.slane %v748, 1
        %v776 = vsel %vm439, %v774, %v775
        %v777 = vrot.slane %v749, 1
        %v778 = vrot.slane %v750, 1
        %v779 = vsel %vm439, %v777, %v778
        %v780 = vrot.slane %v751, 1
        %v781 = vrot.slane %v752, 1
        %v782 = vsel %vm439, %v780, %v781
        %v795 = vadd.f32 %v729, %v767
        %v796 = vadd.f32 %v730, %v766
        %v797 = vadd.f32 %v731, %v770
        %v798 = vadd.f32 %v732, %v769
        %v799 = vadd.f32 %v733, %v773
        %v800 = vadd.f32 %v734, %v772
        %v801 = vadd.f32 %v735, %v776
        %v802 = vadd.f32 %v736, %v775
        %v803 = vadd.f32 %v737, %v779
        %v804 = vadd.f32 %v738, %v778
        %v805 = vadd.f32 %v739, %v782
        %v806 = vadd.f32 %v740, %v781
        %v807 = vadd.f32 %v741, %v701
        %v808 = vadd.f32 %v743, %v704
        %v809 = vadd.f32 %v745, %v707
        %v810 = vadd.f32 %v747, %v710
        %v811 = vadd.f32 %v749, %v713
        %v812 = vadd.f32 %v751, %v716
        %v825 = vrot.slane %v651, 1
        %v826 = vrot.slane %v652, 1
        %v827 = vsel %vm439, %v825, %v826
        %v828 = vrot.slane %v653, 1
        %v829 = vrot.slane %v654, 1
        %v830 = vsel %vm439, %v828, %v829
        %v831 = vrot.slane %v655, 1
        %v832 = vrot.slane %v656, 1
        %v833 = vsel %vm439, %v831, %v832
        %v834 = vrot.slane %v657, 1
        %v835 = vrot.slane %v658, 1
        %v836 = vsel %vm439, %v834, %v835
        %v837 = vrot.slane %v659, 1
        %v838 = vrot.slane %v660, 1
        %v839 = vsel %vm439, %v837, %v838
        %v840 = vrot.slane %v661, 1
        %v841 = vrot.slane %v662, 1
        %v842 = vsel %vm439, %v840, %v841
        %v849 = vadd.f32 %v807, %v827
        %v850 = vadd.f32 %v808, %v830
        %v851 = vadd.f32 %v809, %v833
        %v852 = vadd.f32 %v810, %v836
        %v853 = vadd.f32 %v811, %v839
        %v854 = vadd.f32 %v812, %v842
        %v867 = vrot.slane %v639, 2
        %v868 = vrot.slane %v640, 2
        %v869 = vsel %vm608, %v867, %v868
        %v870 = vrot.slane %v641, 2
        %v871 = vrot.slane %v642, 2
        %v872 = vsel %vm608, %v870, %v871
        %v873 = vrot.slane %v643, 2
        %v874 = vrot.slane %v644, 2
        %v875 = vsel %vm608, %v873, %v874
        %v876 = vrot.slane %v645, 2
        %v877 = vrot.slane %v646, 2
        %v878 = vsel %vm608, %v876, %v877
        %v879 = vrot.slane %v647, 2
        %v880 = vrot.slane %v648, 2
        %v881 = vsel %vm608, %v879, %v880
        %v882 = vrot.slane %v649, 2
        %v883 = vrot.slane %v650, 2
        %v884 = vsel %vm608, %v882, %v883
        %v891 = vadd.f32 %v849, %v869
        %v892 = vadd.f32 %v850, %v872
        %v893 = vadd.f32 %v851, %v875
        %v894 = vadd.f32 %v852, %v878
        %v895 = vadd.f32 %v853, %v881
        %v896 = vadd.f32 %v854, %v884
        %v897 = vmul.f32 %v536, 0.125
        %v898 = vmul.f32 %v537, 0.125
        %v899 = vmul.f32 %v538, 0.125
        %v900 = vmul.f32 %v539, 0.125
        %v901 = vmul.f32 %v540, 0.125
        %v902 = vmul.f32 %v541, 0.125
        %v903 = vmul.f32 %v542, 0.125
        %v904 = vmul.f32 %v543, 0.125
        %v905 = vmul.f32 %v544, 0.125
        %v906 = vmul.f32 %v545, 0.125
        %v907 = vmul.f32 %v795, 0.375
        %v908 = vmul.f32 %v796, 0.375
        %v909 = vmul.f32 %v797, 0.375
        %v910 = vmul.f32 %v798, 0.375
        %v911 = vmul.f32 %v799, 0.375
        %v912 = vmul.f32 %v800, 0.375
        %v913 = vmul.f32 %v801, 0.375
        %v914 = vmul.f32 %v802, 0.375
        %v915 = vmul.f32 %v803, 0.375
        %v916 = vmul.f32 %v804, 0.375
        %v917 = vadd.f32 %v897, %v907
        %v918 = vadd.f32 %v898, %v908
        %v919 = vadd.f32 %v899, %v909
        %v920 = vadd.f32 %v900, %v910
        %v921 = vadd.f32 %v901, %v911
        %v922 = vadd.f32 %v902, %v912
        %v923 = vadd.f32 %v903, %v913
        %v924 = vadd.f32 %v904, %v914
        %v925 = vadd.f32 %v905, %v915
        %v926 = vadd.f32 %v906, %v916
        %v927 = vmul.f32 %v538, 0.375
        %v928 = vmul.f32 %v539, 0.375
        %v929 = vmul.f32 %v540, 0.375
        %v930 = vmul.f32 %v541, 0.375
        %v931 = vmul.f32 %v542, 0.375
        %v932 = vmul.f32 %v543, 0.375
        %v933 = vmul.f32 %v544, 0.375
        %v934 = vmul.f32 %v545, 0.375
        %v935 = vmul.f32 %v546, 0.375
        %v936 = vmul.f32 %v547, 0.375
        %v937 = vadd.f32 %v917, %v927
        %v938 = vadd.f32 %v918, %v928
        %v939 = vadd.f32 %v919, %v929
        %v940 = vadd.f32 %v920, %v930
        %v941 = vadd.f32 %v921, %v931
        %v942 = vadd.f32 %v922, %v932
        %v943 = vadd.f32 %v923, %v933
        %v944 = vadd.f32 %v924, %v934
        %v945 = vadd.f32 %v925, %v935
        %v946 = vadd.f32 %v926, %v936
        %v947 = vmul.f32 %v797, 0.125
        %v948 = vmul.f32 %v798, 0.125
        %v949 = vmul.f32 %v799, 0.125
        %v950 = vmul.f32 %v800, 0.125
        %v951 = vmul.f32 %v801, 0.125
        %v952 = vmul.f32 %v802, 0.125
        %v953 = vmul.f32 %v803, 0.125
        %v954 = vmul.f32 %v804, 0.125
        %v955 = vmul.f32 %v805, 0.125
        %v956 = vmul.f32 %v806, 0.125
        %v957 = vadd.f32 %v937, %v947
        %v958 = vadd.f32 %v938, %v948
        %v959 = vadd.f32 %v939, %v949
        %v960 = vadd.f32 %v940, %v950
        %v961 = vadd.f32 %v941, %v951
        %v962 = vadd.f32 %v942, %v952
        %v963 = vadd.f32 %v943, %v953
        %v964 = vadd.f32 %v944, %v954
        %v965 = vadd.f32 %v945, %v955
        %v966 = vadd.f32 %v946, %v956
        %v967 = vmul.f32 %v795, 0.125
        %v968 = vmul.f32 %v796, 0.125
        %v969 = vadd.f32 %v967, %v927
        %v970 = vadd.f32 %v968, %v928
        %v971 = vadd.f32 %v947, %v929
        %v972 = vadd.f32 %v948, %v930
        %v973 = vadd.f32 %v949, %v931
        %v974 = vadd.f32 %v950, %v932
        %v975 = vadd.f32 %v951, %v933
        %v976 = vadd.f32 %v952, %v934
        %v977 = vadd.f32 %v969, %v909
        %v978 = vadd.f32 %v970, %v910
        %v979 = vadd.f32 %v971, %v911
        %v980 = vadd.f32 %v972, %v912
        %v981 = vadd.f32 %v973, %v913
        %v982 = vadd.f32 %v974, %v914
        %v983 = vadd.f32 %v975, %v915
        %v984 = vadd.f32 %v976, %v916
        %v985 = vmul.f32 %v546, 0.125
        %v986 = vmul.f32 %v547, 0.125
        %v987 = vadd.f32 %v977, %v901
        %v988 = vadd.f32 %v978, %v902
        %v989 = vadd.f32 %v979, %v903
        %v990 = vadd.f32 %v980, %v904
        %v991 = vadd.f32 %v981, %v905
        %v992 = vadd.f32 %v982, %v906
        %v993 = vadd.f32 %v983, %v985
        %v994 = vadd.f32 %v984, %v986
        %v995 = vmul.f32 %v633, 0.125
        %v996 = vmul.f32 %v634, 0.125
        %v997 = vmul.f32 %v635, 0.125
        %v998 = vmul.f32 %v636, 0.125
        %v999 = vmul.f32 %v637, 0.125
        %v1000 = vmul.f32 %v891, 0.375
        %v1001 = vmul.f32 %v892, 0.375
        %v1002 = vmul.f32 %v893, 0.375
        %v1003 = vmul.f32 %v894, 0.375
        %v1004 = vmul.f32 %v895, 0.375
        %v1005 = vadd.f32 %v995, %v1000
        %v1006 = vadd.f32 %v996, %v1001
        %v1007 = vadd.f32 %v997, %v1002
        %v1008 = vadd.f32 %v998, %v1003
        %v1009 = vadd.f32 %v999, %v1004
        %v1010 = vmul.f32 %v634, 0.375
        %v1011 = vmul.f32 %v635, 0.375
        %v1012 = vmul.f32 %v636, 0.375
        %v1013 = vmul.f32 %v637, 0.375
        %v1014 = vmul.f32 %v638, 0.375
        %v1015 = vadd.f32 %v1005, %v1010
        %v1016 = vadd.f32 %v1006, %v1011
        %v1017 = vadd.f32 %v1007, %v1012
        %v1018 = vadd.f32 %v1008, %v1013
        %v1019 = vadd.f32 %v1009, %v1014
        %v1020 = vmul.f32 %v892, 0.125
        %v1021 = vmul.f32 %v893, 0.125
        %v1022 = vmul.f32 %v894, 0.125
        %v1023 = vmul.f32 %v895, 0.125
        %v1024 = vmul.f32 %v896, 0.125
        %v1025 = vadd.f32 %v1015, %v1020
        %v1026 = vadd.f32 %v1016, %v1021
        %v1027 = vadd.f32 %v1017, %v1022
        %v1028 = vadd.f32 %v1018, %v1023
        %v1029 = vadd.f32 %v1019, %v1024
        %v1030 = vmul.f32 %v891, 0.125
        %v1031 = vadd.f32 %v1030, %v1010
        %v1032 = vadd.f32 %v1020, %v1011
        %v1033 = vadd.f32 %v1021, %v1012
        %v1034 = vadd.f32 %v1022, %v1013
        %v1035 = vadd.f32 %v1031, %v1001
        %v1036 = vadd.f32 %v1032, %v1002
        %v1037 = vadd.f32 %v1033, %v1003
        %v1038 = vadd.f32 %v1034, %v1004
        %v1039 = vmul.f32 %v638, 0.125
        %v1040 = vadd.f32 %v1035, %v997
        %v1041 = vadd.f32 %v1036, %v998
        %v1042 = vadd.f32 %v1037, %v999
        %v1043 = vadd.f32 %v1038, %v1039
        %v1044 = vld [vmem:[%s4] sm:$0xf]
        %s1045 = scalar_lea.vmem %s4, 4
        %v1046 = vld [vmem:[%s1045] sm:$0xf]
        %vm1047 = vcmask 31744
        %v1049 = vsel %vm1047, %v1025, 0
        %v1052 = vsel %vm1047, %v1026, 0
        %v1055 = vsel %vm1047, %v1027, 0
        %v1058 = vsel %vm1047, %v1028, 0
        %vm1060 = vcmask 1043456
        %v1062 = vsel %vm1060, %v1046, 0
        %1064 = vmatprep.subr.mxu0 0.0
        %1065 = vmatpush1.msra.mxu0 0.0
        %1066 = vmatprep.subr.mxu0 0.0
        %1067 = vmatpush1.msra.mxu0 0.0
        %1068 = vmatprep.subr.mxu0 0.0
        %1069 = vmatpush1.msra.mxu0 0.0
        %1070 = vmatprep.subr.mxu0 0.0
        %1071 = vmatpush1.msra.mxu0 0.0
        %1072 = vmatprep.subr.mxu0 0.0
        %1073 = vmatpush1.msra.mxu0 0.0
        %1074 = vmatprep.subr.mxu0 0.0
        %1075 = vmatpush1.msra.mxu0 0.0
        %1076 = vmatprep.subr.mxu0 0.0
        %1077 = vmatpush1.msra.mxu0 0.0
        %1078 = vmatprep.subr.mxu0 0.0
        %1079 = vmatpush1.msra.mxu0 0.0
        %1080 = vmatprep.subr.mxu0 0.0
        %1081 = vmatpush1.msra.mxu0 0.0
        %1082 = vmatprep.subr.mxu0 0.0
        %1083 = vmatpush1.msra.mxu0 0.0
        %1084 = vmatprep.subr.mxu0 0.0
        %1085 = vmatpush1.msra.mxu0 0.0
        %1086 = vmatprep.subr.mxu0 0.0
        %1087 = vmatpush1.msra.mxu0 0.0
        %1088 = vmatprep.subr.mxu0 0.0
        %1089 = vmatpush1.msra.mxu0 0.0
        %1090 = vmatprep.subr.mxu0 0.0
        %1091 = vmatpush1.msra.mxu0 0.0
        %1092 = vmatprep.subr.mxu0 0.0
        %1093 = vmatpush1.msra.mxu0 0.0
        %1094 = vmatprep.subr.mxu0 0.0
        %1095 = vmatpush1.msra.mxu0 %v1062
        %1096 = vmatprep.subr.mxu0 0.0
        %1097 = vmatpush2.msra.mxu0 0.0
        %1098 = vmatprep.subr.mxu0 0.0
        %1099 = vmatpush2.msra.mxu0 0.0
        %1100 = vmatprep.subr.mxu0 0.0
        %1101 = vmatpush2.msra.mxu0 0.0
        %1102 = vmatprep.subr.mxu0 0.0
        %1103 = vmatpush2.msra.mxu0 0.0
        %1104 = vmatprep.subr.mxu0 0.0
        %1105 = vmatpush2.msra.mxu0 0.0
        %1106 = vmatprep.subr.mxu0 0.0
        %1107 = vmatpush2.msra.mxu0 0.0
        %1108 = vmatprep.subr.mxu0 0.0
        %1109 = vmatpush2.msra.mxu0 0.0
        %1110 = vmatprep.subr.mxu0 0.0
        %1111 = vmatpush2.msra.mxu0 0.0
        %1112 = vmatprep.subr.mxu0 0.0
        %1113 = vmatpush2.msra.mxu0 0.0
        %1114 = vmatprep.subr.mxu0 0.0
        %1115 = vmatpush2.msra.mxu0 0.0
        %1116 = vmatprep.subr.mxu0 0.0
        %1117 = vmatpush2.msra.mxu0 0.0
        %1118 = vmatprep.subr.mxu0 0.0
        %1119 = vmatpush2.msra.mxu0 0.0
        %1120 = vmatprep.subr.mxu0 0.0
        %1121 = vmatpush2.msra.mxu0 0.0
        %1122 = vmatprep.subr.mxu0 0.0
        %1123 = vmatpush2.msra.mxu0 0.0
        %1124 = vmatprep.subr.mxu0 0.0
        %1125 = vmatpush2.msra.mxu0 0.0
        %1126 = vmatprep.subr.mxu0 0.0
        %1127 = vmatpush2.msra.mxu0 0.0
        %1128 = vmatprep.mubr.f32.mxu0 0.0
        %1129 = vmatmul.mubr.f32.gmra.mxu0 %v1049
        %v1130 = vpop.f32.mrf.mxu0
        %v1131 = vadd.f32 0.0, %v1130
        %v1132 = vpop.f32.mrf.mxu0
        %1133 = vmatprep.mubr.f32.mxu0 0.0
        %1134 = vmatmul.mubr.f32.gmra.mxu0 %v1052
        %v1135 = vpop.f32.mrf.mxu0
        %v1136 = vadd.f32 0.0, %v1135
        %v1137 = vpop.f32.mrf.mxu0
        %1138 = vmatprep.mubr.f32.mxu0 0.0
        %1139 = vmatmul.mubr.f32.gmra.mxu0 %v1055
        %v1140 = vpop.f32.mrf.mxu0
        %v1141 = vadd.f32 0.0, %v1140
        %v1142 = vpop.f32.mrf.mxu0
        %1143 = vmatprep.mubr.f32.mxu0 0.0
        %1144 = vmatmul.mubr.f32.gmra.mxu0 %v1058
        %v1145 = vpop.f32.mrf.mxu0
        %v1146 = vadd.f32 0.0, %v1145
        %v1147 = vpop.f32.mrf.mxu0
        %1148 = vdwg.mxu0
        %v1150 = vsel %vm1047, %v957, 0
        %v1153 = vsel %vm1047, %v959, 0
        %v1156 = vsel %vm1047, %v961, 0
        %v1159 = vsel %vm1047, %v963, 0
        %v1162 = vsel %vm1060, %v1044, 0
        %1164 = vmatprep.subr.mxu0 0.0
        %1165 = vmatpush1.msra.mxu0 0.0
        %1166 = vmatprep.subr.mxu0 0.0
        %1167 = vmatpush1.msra.mxu0 0.0
        %1168 = vmatprep.subr.mxu0 0.0
        %1169 = vmatpush1.msra.mxu0 0.0
        %1170 = vmatprep.subr.mxu0 0.0
        %1171 = vmatpush1.msra.mxu0 0.0
        %1172 = vmatprep.subr.mxu0 0.0
        %1173 = vmatpush1.msra.mxu0 0.0
        %1174 = vmatprep.subr.mxu0 0.0
        %1175 = vmatpush1.msra.mxu0 0.0
        %1176 = vmatprep.subr.mxu0 0.0
        %1177 = vmatpush1.msra.mxu0 0.0
        %1178 = vmatprep.subr.mxu0 0.0
        %1179 = vmatpush1.msra.mxu0 0.0
        %1180 = vmatprep.subr.mxu0 0.0
        %1181 = vmatpush1.msra.mxu0 0.0
        %1182 = vmatprep.subr.mxu0 0.0
        %1183 = vmatpush1.msra.mxu0 0.0
        %1184 = vmatprep.subr.mxu0 0.0
        %1185 = vmatpush1.msra.mxu0 0.0
        %1186 = vmatprep.subr.mxu0 0.0
        %1187 = vmatpush1.msra.mxu0 0.0
        %1188 = vmatprep.subr.mxu0 0.0
        %1189 = vmatpush1.msra.mxu0 0.0
        %1190 = vmatprep.subr.mxu0 0.0
        %1191 = vmatpush1.msra.mxu0 0.0
        %1192 = vmatprep.subr.mxu0 0.0
        %1193 = vmatpush1.msra.mxu0 0.0
        %1194 = vmatprep.subr.mxu0 0.0
        %1195 = vmatpush1.msra.mxu0 %v1162
        %1196 = vmatprep.subr.mxu0 0.0
        %1197 = vmatpush2.msra.mxu0 0.0
        %1198 = vmatprep.subr.mxu0 0.0
        %1199 = vmatpush2.msra.mxu0 0.0
        %1200 = vmatprep.subr.mxu0 0.0
        %1201 = vmatpush2.msra.mxu0 0.0
        %1202 = vmatprep.subr.mxu0 0.0
        %1203 = vmatpush2.msra.mxu0 0.0
        %1204 = vmatprep.subr.mxu0 0.0
        %1205 = vmatpush2.msra.mxu0 0.0
        %1206 = vmatprep.subr.mxu0 0.0
        %1207 = vmatpush2.msra.mxu0 0.0
        %1208 = vmatprep.subr.mxu0 0.0
        %1209 = vmatpush2.msra.mxu0 0.0
        %1210 = vmatprep.subr.mxu0 0.0
        %1211 = vmatpush2.msra.mxu0 0.0
        %1212 = vmatprep.subr.mxu0 0.0
        %1213 = vmatpush2.msra.mxu0 0.0
        %1214 = vmatprep.subr.mxu0 0.0
        %1215 = vmatpush2.msra.mxu0 0.0
        %1216 = vmatprep.subr.mxu0 0.0
        %1217 = vmatpush2.msra.mxu0 0.0
        %1218 = vmatprep.subr.mxu0 0.0
        %1219 = vmatpush2.msra.mxu0 0.0
        %1220 = vmatprep.subr.mxu0 0.0
        %1221 = vmatpush2.msra.mxu0 0.0
        %1222 = vmatprep.subr.mxu0 0.0
        %1223 = vmatpush2.msra.mxu0 0.0
        %1224 = vmatprep.subr.mxu0 0.0
        %1225 = vmatpush2.msra.mxu0 0.0
        %1226 = vmatprep.subr.mxu0 0.0
        %1227 = vmatpush2.msra.mxu0 0.0
        %1228 = vmatprep.mubr.f32.mxu0 0.0
        %1229 = vmatmul.mubr.f32.gmra.mxu0 %v1150
        %v1230 = vpop.f32.mrf.mxu0
        %v1231 = vadd.f32 %v1131, %v1230
        %v1232 = vpop.f32.mrf.mxu0
        %1233 = vmatprep.mubr.f32.mxu0 0.0
        %1234 = vmatmul.mubr.f32.gmra.mxu0 %v1153
        %v1235 = vpop.f32.mrf.mxu0
        %v1236 = vadd.f32 %v1136, %v1235
        %v1237 = vpop.f32.mrf.mxu0
        %1238 = vmatprep.mubr.f32.mxu0 0.0
        %1239 = vmatmul.mubr.f32.gmra.mxu0 %v1156
        %v1240 = vpop.f32.mrf.mxu0
        %v1241 = vadd.f32 %v1141, %v1240
        %v1242 = vpop.f32.mrf.mxu0
        %1243 = vmatprep.mubr.f32.mxu0 0.0
        %1244 = vmatmul.mubr.f32.gmra.mxu0 %v1159
        %v1245 = vpop.f32.mrf.mxu0
        %v1246 = vadd.f32 %v1146, %v1245
        %v1247 = vpop.f32.mrf.mxu0
        %1248 = vdwg.mxu0
        %v1253 = vrot.slane %v957, 1
        %v1254 = vrot.slane %v958, 1
        %v1255 = vsel %vm439, %v1253, %v1254
        %v1256 = vrot.slane %v959, 1
        %v1257 = vrot.slane %v960, 1
        %v1258 = vsel %vm439, %v1256, %v1257
        %v1259 = vrot.slane %v961, 1
        %v1260 = vrot.slane %v962, 1
        %v1261 = vsel %vm439, %v1259, %v1260
        %v1262 = vrot.slane %v963, 1
        %v1263 = vrot.slane %v964, 1
        %v1264 = vsel %vm439, %v1262, %v1263
        %s1265 = scalar_lea.vmem %s4, 8
        %v1266 = vld [vmem:[%s1265] sm:$0xf]
        %v1267 = vsel %vm1047, %v1255, 0
        %v1269 = vsel %vm1047, %v1258, 0
        %v1271 = vsel %vm1047, %v1261, 0
        %v1273 = vsel %vm1047, %v1264, 0
        %v1276 = vsel %vm1060, %v1266, 0
        %1278 = vmatprep.subr.mxu0 0.0
        %1279 = vmatpush1.msra.mxu0 0.0
        %1280 = vmatprep.subr.mxu0 0.0
        %1281 = vmatpush1.msra.mxu0 0.0
        %1282 = vmatprep.subr.mxu0 0.0
        %1283 = vmatpush1.msra.mxu0 0.0
        %1284 = vmatprep.subr.mxu0 0.0
        %1285 = vmatpush1.msra.mxu0 0.0
        %1286 = vmatprep.subr.mxu0 0.0
        %1287 = vmatpush1.msra.mxu0 0.0
        %1288 = vmatprep.subr.mxu0 0.0
        %1289 = vmatpush1.msra.mxu0 0.0
        %1290 = vmatprep.subr.mxu0 0.0
        %1291 = vmatpush1.msra.mxu0 0.0
        %1292 = vmatprep.subr.mxu0 0.0
        %1293 = vmatpush1.msra.mxu0 0.0
        %1294 = vmatprep.subr.mxu0 0.0
        %1295 = vmatpush1.msra.mxu0 0.0
        %1296 = vmatprep.subr.mxu0 0.0
        %1297 = vmatpush1.msra.mxu0 0.0
        %1298 = vmatprep.subr.mxu0 0.0
        %1299 = vmatpush1.msra.mxu0 0.0
        %1300 = vmatprep.subr.mxu0 0.0
        %1301 = vmatpush1.msra.mxu0 0.0
        %1302 = vmatprep.subr.mxu0 0.0
        %1303 = vmatpush1.msra.mxu0 0.0
        %1304 = vmatprep.subr.mxu0 0.0
        %1305 = vmatpush1.msra.mxu0 0.0
        %1306 = vmatprep.subr.mxu0 0.0
        %1307 = vmatpush1.msra.mxu0 0.0
        %1308 = vmatprep.subr.mxu0 0.0
        %1309 = vmatpush1.msra.mxu0 %v1276
        %1310 = vmatprep.subr.mxu0 0.0
        %1311 = vmatpush2.msra.mxu0 0.0
        %1312 = vmatprep.subr.mxu0 0.0
        %1313 = vmatpush2.msra.mxu0 0.0
        %1314 = vmatprep.subr.mxu0 0.0
        %1315 = vmatpush2.msra.mxu0 0.0
        %1316 = vmatprep.subr.mxu0 0.0
        %1317 = vmatpush2.msra.mxu0 0.0
        %1318 = vmatprep.subr.mxu0 0.0
        %1319 = vmatpush2.msra.mxu0 0.0
        %1320 = vmatprep.subr.mxu0 0.0
        %1321 = vmatpush2.msra.mxu0 0.0
        %1322 = vmatprep.subr.mxu0 0.0
        %1323 = vmatpush2.msra.mxu0 0.0
        %1324 = vmatprep.subr.mxu0 0.0
        %1325 = vmatpush2.msra.mxu0 0.0
        %1326 = vmatprep.subr.mxu0 0.0
        %1327 = vmatpush2.msra.mxu0 0.0
        %1328 = vmatprep.subr.mxu0 0.0
        %1329 = vmatpush2.msra.mxu0 0.0
        %1330 = vmatprep.subr.mxu0 0.0
        %1331 = vmatpush2.msra.mxu0 0.0
        %1332 = vmatprep.subr.mxu0 0.0
        %1333 = vmatpush2.msra.mxu0 0.0
        %1334 = vmatprep.subr.mxu0 0.0
        %1335 = vmatpush2.msra.mxu0 0.0
        %1336 = vmatprep.subr.mxu0 0.0
        %1337 = vmatpush2.msra.mxu0 0.0
        %1338 = vmatprep.subr.mxu0 0.0
        %1339 = vmatpush2.msra.mxu0 0.0
        %1340 = vmatprep.subr.mxu0 0.0
        %1341 = vmatpush2.msra.mxu0 0.0
        %1342 = vmatprep.mubr.f32.mxu0 0.0
        %1343 = vmatmul.mubr.f32.gmra.mxu0 %v1267
        %v1344 = vpop.f32.mrf.mxu0
        %v1345 = vadd.f32 0.0, %v1344
        %v1346 = vpop.f32.mrf.mxu0
        %1347 = vmatprep.mubr.f32.mxu0 0.0
        %1348 = vmatmul.mubr.f32.gmra.mxu0 %v1269
        %v1349 = vpop.f32.mrf.mxu0
        %v1350 = vadd.f32 0.0, %v1349
        %v1351 = vpop.f32.mrf.mxu0
        %1352 = vmatprep.mubr.f32.mxu0 0.0
        %1353 = vmatmul.mubr.f32.gmra.mxu0 %v1271
        %v1354 = vpop.f32.mrf.mxu0
        %v1355 = vadd.f32 0.0, %v1354
        %v1356 = vpop.f32.mrf.mxu0
        %1357 = vmatprep.mubr.f32.mxu0 0.0
        %1358 = vmatmul.mubr.f32.gmra.mxu0 %v1273
        %v1359 = vpop.f32.mrf.mxu0
        %v1360 = vadd.f32 0.0, %v1359
        %v1361 = vpop.f32.mrf.mxu0
        %1362 = vdwg.mxu0
        %v1363 = vadd.f32 %v1231, %v1345
        %v1364 = vadd.f32 %v1236, %v1350
        %v1365 = vadd.f32 %v1241, %v1355
        %v1366 = vadd.f32 %v1246, %v1360
        %s1367 = scalar_lea.vmem %s4, 12
        %v1368 = vld [vmem:[%s1367] sm:$0xf]
        %v1370 = vsel %vm1047, %v987, 0
        %v1373 = vsel %vm1047, %v989, 0
        %v1376 = vsel %vm1047, %v991, 0
        %v1379 = vsel %vm1047, %v993, 0
        %v1382 = vsel %vm1060, %v1368, 0
        %1384 = vmatprep.subr.mxu0 0.0
        %1385 = vmatpush1.msra.mxu0 0.0
        %1386 = vmatprep.subr.mxu0 0.0
        %1387 = vmatpush1.msra.mxu0 0.0
        %1388 = vmatprep.subr.mxu0 0.0
        %1389 = vmatpush1.msra.mxu0 0.0
        %1390 = vmatprep.subr.mxu0 0.0
        %1391 = vmatpush1.msra.mxu0 0.0
        %1392 = vmatprep.subr.mxu0 0.0
        %1393 = vmatpush1.msra.mxu0 0.0
        %1394 = vmatprep.subr.mxu0 0.0
        %1395 = vmatpush1.msra.mxu0 0.0
        %1396 = vmatprep.subr.mxu0 0.0
        %1397 = vmatpush1.msra.mxu0 0.0
        %1398 = vmatprep.subr.mxu0 0.0
        %1399 = vmatpush1.msra.mxu0 0.0
        %1400 = vmatprep.subr.mxu0 0.0
        %1401 = vmatpush1.msra.mxu0 0.0
        %1402 = vmatprep.subr.mxu0 0.0
        %1403 = vmatpush1.msra.mxu0 0.0
        %1404 = vmatprep.subr.mxu0 0.0
        %1405 = vmatpush1.msra.mxu0 0.0
        %1406 = vmatprep.subr.mxu0 0.0
        %1407 = vmatpush1.msra.mxu0 0.0
        %1408 = vmatprep.subr.mxu0 0.0
        %1409 = vmatpush1.msra.mxu0 0.0
        %1410 = vmatprep.subr.mxu0 0.0
        %1411 = vmatpush1.msra.mxu0 0.0
        %1412 = vmatprep.subr.mxu0 0.0
        %1413 = vmatpush1.msra.mxu0 0.0
        %1414 = vmatprep.subr.mxu0 0.0
        %1415 = vmatpush1.msra.mxu0 %v1382
        %1416 = vmatprep.subr.mxu0 0.0
        %1417 = vmatpush2.msra.mxu0 0.0
        %1418 = vmatprep.subr.mxu0 0.0
        %1419 = vmatpush2.msra.mxu0 0.0
        %1420 = vmatprep.subr.mxu0 0.0
        %1421 = vmatpush2.msra.mxu0 0.0
        %1422 = vmatprep.subr.mxu0 0.0
        %1423 = vmatpush2.msra.mxu0 0.0
        %1424 = vmatprep.subr.mxu0 0.0
        %1425 = vmatpush2.msra.mxu0 0.0
        %1426 = vmatprep.subr.mxu0 0.0
        %1427 = vmatpush2.msra.mxu0 0.0
        %1428 = vmatprep.subr.mxu0 0.0
        %1429 = vmatpush2.msra.mxu0 0.0
        %1430 = vmatprep.subr.mxu0 0.0
        %1431 = vmatpush2.msra.mxu0 0.0
        %1432 = vmatprep.subr.mxu0 0.0
        %1433 = vmatpush2.msra.mxu0 0.0
        %1434 = vmatprep.subr.mxu0 0.0
        %1435 = vmatpush2.msra.mxu0 0.0
        %1436 = vmatprep.subr.mxu0 0.0
        %1437 = vmatpush2.msra.mxu0 0.0
        %1438 = vmatprep.subr.mxu0 0.0
        %1439 = vmatpush2.msra.mxu0 0.0
        %1440 = vmatprep.subr.mxu0 0.0
        %1441 = vmatpush2.msra.mxu0 0.0
        %1442 = vmatprep.subr.mxu0 0.0
        %1443 = vmatpush2.msra.mxu0 0.0
        %1444 = vmatprep.subr.mxu0 0.0
        %1445 = vmatpush2.msra.mxu0 0.0
        %1446 = vmatprep.subr.mxu0 0.0
        %1447 = vmatpush2.msra.mxu0 0.0
        %1448 = vmatprep.mubr.f32.mxu0 0.0
        %1449 = vmatmul.mubr.f32.gmra.mxu0 %v1370
        %v1450 = vpop.f32.mrf.mxu0
        %v1451 = vadd.f32 0.0, %v1450
        %v1452 = vpop.f32.mrf.mxu0
        %1453 = vmatprep.mubr.f32.mxu0 0.0
        %1454 = vmatmul.mubr.f32.gmra.mxu0 %v1373
        %v1455 = vpop.f32.mrf.mxu0
        %v1456 = vadd.f32 0.0, %v1455
        %v1457 = vpop.f32.mrf.mxu0
        %1458 = vmatprep.mubr.f32.mxu0 0.0
        %1459 = vmatmul.mubr.f32.gmra.mxu0 %v1376
        %v1460 = vpop.f32.mrf.mxu0
        %v1461 = vadd.f32 0.0, %v1460
        %v1462 = vpop.f32.mrf.mxu0
        %1463 = vmatprep.mubr.f32.mxu0 0.0
        %1464 = vmatmul.mubr.f32.gmra.mxu0 %v1379
        %v1465 = vpop.f32.mrf.mxu0
        %v1466 = vadd.f32 0.0, %v1465
        %v1467 = vpop.f32.mrf.mxu0
        %1468 = vdwg.mxu0
        %v1469 = vadd.f32 %v1363, %v1451
        %v1470 = vadd.f32 %v1364, %v1456
        %v1471 = vadd.f32 %v1365, %v1461
        %v1472 = vadd.f32 %v1366, %v1466
        %s1473 = scalar_lea.vmem %s4, 16
        %v1474 = vld [vmem:[%s1473] sm:$0xf]
        %v1476 = vsel %vm1047, %v1040, 0
        %v1479 = vsel %vm1047, %v1041, 0
        %v1482 = vsel %vm1047, %v1042, 0
        %v1485 = vsel %vm1047, %v1043, 0
        %v1488 = vsel %vm1060, %v1474, 0
        %1490 = vmatprep.subr.mxu0 0.0
        %1491 = vmatpush1.msra.mxu0 0.0
        %1492 = vmatprep.subr.mxu0 0.0
        %1493 = vmatpush1.msra.mxu0 0.0
        %1494 = vmatprep.subr.mxu0 0.0
        %1495 = vmatpush1.msra.mxu0 0.0
        %1496 = vmatprep.subr.mxu0 0.0
        %1497 = vmatpush1.msra.mxu0 0.0
        %1498 = vmatprep.subr.mxu0 0.0
        %1499 = vmatpush1.msra.mxu0 0.0
        %1500 = vmatprep.subr.mxu0 0.0
        %1501 = vmatpush1.msra.mxu0 0.0
        %1502 = vmatprep.subr.mxu0 0.0
        %1503 = vmatpush1.msra.mxu0 0.0
        %1504 = vmatprep.subr.mxu0 0.0
        %1505 = vmatpush1.msra.mxu0 0.0
        %1506 = vmatprep.subr.mxu0 0.0
        %1507 = vmatpush1.msra.mxu0 0.0
        %1508 = vmatprep.subr.mxu0 0.0
        %1509 = vmatpush1.msra.mxu0 0.0
        %1510 = vmatprep.subr.mxu0 0.0
        %1511 = vmatpush1.msra.mxu0 0.0
        %1512 = vmatprep.subr.mxu0 0.0
        %1513 = vmatpush1.msra.mxu0 0.0
        %1514 = vmatprep.subr.mxu0 0.0
        %1515 = vmatpush1.msra.mxu0 0.0
        %1516 = vmatprep.subr.mxu0 0.0
        %1517 = vmatpush1.msra.mxu0 0.0
        %1518 = vmatprep.subr.mxu0 0.0
        %1519 = vmatpush1.msra.mxu0 0.0
        %1520 = vmatprep.subr.mxu0 0.0
        %1521 = vmatpush1.msra.mxu0 %v1488
        %1522 = vmatprep.subr.mxu0 0.0
        %1523 = vmatpush2.msra.mxu0 0.0
        %1524 = vmatprep.subr.mxu0 0.0
        %1525 = vmatpush2.msra.mxu0 0.0
        %1526 = vmatprep.subr.mxu0 0.0
        %1527 = vmatpush2.msra.mxu0 0.0
        %1528 = vmatprep.subr.mxu0 0.0
        %1529 = vmatpush2.msra.mxu0 0.0
        %1530 = vmatprep.subr.mxu0 0.0
        %1531 = vmatpush2.msra.mxu0 0.0
        %1532 = vmatprep.subr.mxu0 0.0
        %1533 = vmatpush2.msra.mxu0 0.0
        %1534 = vmatprep.subr.mxu0 0.0
        %1535 = vmatpush2.msra.mxu0 0.0
        %1536 = vmatprep.subr.mxu0 0.0
        %1537 = vmatpush2.msra.mxu0 0.0
        %1538 = vmatprep.subr.mxu0 0.0
        %1539 = vmatpush2.msra.mxu0 0.0
        %1540 = vmatprep.subr.mxu0 0.0
        %1541 = vmatpush2.msra.mxu0 0.0
        %1542 = vmatprep.subr.mxu0 0.0
        %1543 = vmatpush2.msra.mxu0 0.0
        %1544 = vmatprep.subr.mxu0 0.0
        %1545 = vmatpush2.msra.mxu0 0.0
        %1546 = vmatprep.subr.mxu0 0.0
        %1547 = vmatpush2.msra.mxu0 0.0
        %1548 = vmatprep.subr.mxu0 0.0
        %1549 = vmatpush2.msra.mxu0 0.0
        %1550 = vmatprep.subr.mxu0 0.0
        %1551 = vmatpush2.msra.mxu0 0.0
        %1552 = vmatprep.subr.mxu0 0.0
        %1553 = vmatpush2.msra.mxu0 0.0
        %1554 = vmatprep.mubr.f32.mxu0 0.0
        %1555 = vmatmul.mubr.f32.gmra.mxu0 %v1476
        %v1556 = vpop.f32.mrf.mxu0
        %v1557 = vadd.f32 0.0, %v1556
        %v1558 = vpop.f32.mrf.mxu0
        %1559 = vmatprep.mubr.f32.mxu0 0.0
        %1560 = vmatmul.mubr.f32.gmra.mxu0 %v1479
        %v1561 = vpop.f32.mrf.mxu0
        %v1562 = vadd.f32 0.0, %v1561
        %v1563 = vpop.f32.mrf.mxu0
        %1564 = vmatprep.mubr.f32.mxu0 0.0
        %1565 = vmatmul.mubr.f32.gmra.mxu0 %v1482
        %v1566 = vpop.f32.mrf.mxu0
        %v1567 = vadd.f32 0.0, %v1566
        %v1568 = vpop.f32.mrf.mxu0
        %1569 = vmatprep.mubr.f32.mxu0 0.0
        %1570 = vmatmul.mubr.f32.gmra.mxu0 %v1485
        %v1571 = vpop.f32.mrf.mxu0
        %v1572 = vadd.f32 0.0, %v1571
        %v1573 = vpop.f32.mrf.mxu0
        %1574 = vdwg.mxu0
        %v1575 = vadd.f32 %v1469, %v1557
        %v1576 = vadd.f32 %v1470, %v1562
        %v1577 = vadd.f32 %v1471, %v1567
        %v1578 = vadd.f32 %v1472, %v1572
        %v1583 = vrot.slane %v987, 1
        %v1584 = vrot.slane %v988, 1
        %v1585 = vsel %vm439, %v1583, %v1584
        %v1586 = vrot.slane %v989, 1
        %v1587 = vrot.slane %v990, 1
        %v1588 = vsel %vm439, %v1586, %v1587
        %v1589 = vrot.slane %v991, 1
        %v1590 = vrot.slane %v992, 1
        %v1591 = vsel %vm439, %v1589, %v1590
        %v1592 = vrot.slane %v993, 1
        %v1593 = vrot.slane %v994, 1
        %v1594 = vsel %vm439, %v1592, %v1593
        %s1595 = scalar_lea.vmem %s4, 20
        %v1596 = vld [vmem:[%s1595] sm:$0xf]
        %v1597 = vsel %vm1047, %v1585, 0
        %v1599 = vsel %vm1047, %v1588, 0
        %v1601 = vsel %vm1047, %v1591, 0
        %v1603 = vsel %vm1047, %v1594, 0
        %v1606 = vsel %vm1060, %v1596, 0
        %1608 = vmatprep.subr.mxu0 0.0
        %1609 = vmatpush1.msra.mxu0 0.0
        %1610 = vmatprep.subr.mxu0 0.0
        %1611 = vmatpush1.msra.mxu0 0.0
        %1612 = vmatprep.subr.mxu0 0.0
        %1613 = vmatpush1.msra.mxu0 0.0
        %1614 = vmatprep.subr.mxu0 0.0
        %1615 = vmatpush1.msra.mxu0 0.0
        %1616 = vmatprep.subr.mxu0 0.0
        %1617 = vmatpush1.msra.mxu0 0.0
        %1618 = vmatprep.subr.mxu0 0.0
        %1619 = vmatpush1.msra.mxu0 0.0
        %1620 = vmatprep.subr.mxu0 0.0
        %1621 = vmatpush1.msra.mxu0 0.0
        %1622 = vmatprep.subr.mxu0 0.0
        %1623 = vmatpush1.msra.mxu0 0.0
        %1624 = vmatprep.subr.mxu0 0.0
        %1625 = vmatpush1.msra.mxu0 0.0
        %1626 = vmatprep.subr.mxu0 0.0
        %1627 = vmatpush1.msra.mxu0 0.0
        %1628 = vmatprep.subr.mxu0 0.0
        %1629 = vmatpush1.msra.mxu0 0.0
        %1630 = vmatprep.subr.mxu0 0.0
        %1631 = vmatpush1.msra.mxu0 0.0
        %1632 = vmatprep.subr.mxu0 0.0
        %1633 = vmatpush1.msra.mxu0 0.0
        %1634 = vmatprep.subr.mxu0 0.0
        %1635 = vmatpush1.msra.mxu0 0.0
        %1636 = vmatprep.subr.mxu0 0.0
        %1637 = vmatpush1.msra.mxu0 0.0
        %1638 = vmatprep.subr.mxu0 0.0
        %1639 = vmatpush1.msra.mxu0 %v1606
        %1640 = vmatprep.subr.mxu0 0.0
        %1641 = vmatpush2.msra.mxu0 0.0
        %1642 = vmatprep.subr.mxu0 0.0
        %1643 = vmatpush2.msra.mxu0 0.0
        %1644 = vmatprep.subr.mxu0 0.0
        %1645 = vmatpush2.msra.mxu0 0.0
        %1646 = vmatprep.subr.mxu0 0.0
        %1647 = vmatpush2.msra.mxu0 0.0
        %1648 = vmatprep.subr.mxu0 0.0
        %1649 = vmatpush2.msra.mxu0 0.0
        %1650 = vmatprep.subr.mxu0 0.0
        %1651 = vmatpush2.msra.mxu0 0.0
        %1652 = vmatprep.subr.mxu0 0.0
        %1653 = vmatpush2.msra.mxu0 0.0
        %1654 = vmatprep.subr.mxu0 0.0
        %1655 = vmatpush2.msra.mxu0 0.0
        %1656 = vmatprep.subr.mxu0 0.0
        %1657 = vmatpush2.msra.mxu0 0.0
        %1658 = vmatprep.subr.mxu0 0.0
        %1659 = vmatpush2.msra.mxu0 0.0
        %1660 = vmatprep.subr.mxu0 0.0
        %1661 = vmatpush2.msra.mxu0 0.0
        %1662 = vmatprep.subr.mxu0 0.0
        %1663 = vmatpush2.msra.mxu0 0.0
        %1664 = vmatprep.subr.mxu0 0.0
        %1665 = vmatpush2.msra.mxu0 0.0
        %1666 = vmatprep.subr.mxu0 0.0
        %1667 = vmatpush2.msra.mxu0 0.0
        %1668 = vmatprep.subr.mxu0 0.0
        %1669 = vmatpush2.msra.mxu0 0.0
        %1670 = vmatprep.subr.mxu0 0.0
        %1671 = vmatpush2.msra.mxu0 0.0
        %1672 = vmatprep.mubr.f32.mxu0 0.0
        %1673 = vmatmul.mubr.f32.gmra.mxu0 %v1597
        %v1674 = vpop.f32.mrf.mxu0
        %v1675 = vadd.f32 0.0, %v1674
        %v1676 = vpop.f32.mrf.mxu0
        %1677 = vmatprep.mubr.f32.mxu0 0.0
        %1678 = vmatmul.mubr.f32.gmra.mxu0 %v1599
        %v1679 = vpop.f32.mrf.mxu0
        %v1680 = vadd.f32 0.0, %v1679
        %v1681 = vpop.f32.mrf.mxu0
        %1682 = vmatprep.mubr.f32.mxu0 0.0
        %1683 = vmatmul.mubr.f32.gmra.mxu0 %v1601
        %v1684 = vpop.f32.mrf.mxu0
        %v1685 = vadd.f32 0.0, %v1684
        %v1686 = vpop.f32.mrf.mxu0
        %1687 = vmatprep.mubr.f32.mxu0 0.0
        %1688 = vmatmul.mubr.f32.gmra.mxu0 %v1603
        %v1689 = vpop.f32.mrf.mxu0
        %v1690 = vadd.f32 0.0, %v1689
        %v1691 = vpop.f32.mrf.mxu0
        %1692 = vdwg.mxu0
        %v1693 = vadd.f32 %v1575, %v1675
        %v1694 = vadd.f32 %v1576, %v1680
        %v1695 = vadd.f32 %v1577, %v1685
        %v1696 = vadd.f32 %v1578, %v1690
        %s1697 = scalar_lea.vmem %s4, 24
        %v1698 = vld [vmem:[%s1697] sm:$0xf]
        %v1700 = vsel %vm1047, %v965, 0
        %v1703 = vsel %vm1060, %v1698, 0
        %1705 = vmatprep.subr.mxu0 0.0
        %1706 = vmatpush1.msra.mxu0 0.0
        %1707 = vmatprep.subr.mxu0 0.0
        %1708 = vmatpush1.msra.mxu0 0.0
        %1709 = vmatprep.subr.mxu0 0.0
        %1710 = vmatpush1.msra.mxu0 0.0
        %1711 = vmatprep.subr.mxu0 0.0
        %1712 = vmatpush1.msra.mxu0 0.0
        %1713 = vmatprep.subr.mxu0 0.0
        %1714 = vmatpush1.msra.mxu0 0.0
        %1715 = vmatprep.subr.mxu0 0.0
        %1716 = vmatpush1.msra.mxu0 0.0
        %1717 = vmatprep.subr.mxu0 0.0
        %1718 = vmatpush1.msra.mxu0 0.0
        %1719 = vmatprep.subr.mxu0 0.0
        %1720 = vmatpush1.msra.mxu0 0.0
        %1721 = vmatprep.subr.mxu0 0.0
        %1722 = vmatpush1.msra.mxu0 0.0
        %1723 = vmatprep.subr.mxu0 0.0
        %1724 = vmatpush1.msra.mxu0 0.0
        %1725 = vmatprep.subr.mxu0 0.0
        %1726 = vmatpush1.msra.mxu0 0.0
        %1727 = vmatprep.subr.mxu0 0.0
        %1728 = vmatpush1.msra.mxu0 0.0
        %1729 = vmatprep.subr.mxu0 0.0
        %1730 = vmatpush1.msra.mxu0 0.0
        %1731 = vmatprep.subr.mxu0 0.0
        %1732 = vmatpush1.msra.mxu0 0.0
        %1733 = vmatprep.subr.mxu0 0.0
        %1734 = vmatpush1.msra.mxu0 0.0
        %1735 = vmatprep.subr.mxu0 0.0
        %1736 = vmatpush1.msra.mxu0 %v1703
        %1737 = vmatprep.subr.mxu0 0.0
        %1738 = vmatpush2.msra.mxu0 0.0
        %1739 = vmatprep.subr.mxu0 0.0
        %1740 = vmatpush2.msra.mxu0 0.0
        %1741 = vmatprep.subr.mxu0 0.0
        %1742 = vmatpush2.msra.mxu0 0.0
        %1743 = vmatprep.subr.mxu0 0.0
        %1744 = vmatpush2.msra.mxu0 0.0
        %1745 = vmatprep.subr.mxu0 0.0
        %1746 = vmatpush2.msra.mxu0 0.0
        %1747 = vmatprep.subr.mxu0 0.0
        %1748 = vmatpush2.msra.mxu0 0.0
        %1749 = vmatprep.subr.mxu0 0.0
        %1750 = vmatpush2.msra.mxu0 0.0
        %1751 = vmatprep.subr.mxu0 0.0
        %1752 = vmatpush2.msra.mxu0 0.0
        %1753 = vmatprep.subr.mxu0 0.0
        %1754 = vmatpush2.msra.mxu0 0.0
        %1755 = vmatprep.subr.mxu0 0.0
        %1756 = vmatpush2.msra.mxu0 0.0
        %1757 = vmatprep.subr.mxu0 0.0
        %1758 = vmatpush2.msra.mxu0 0.0
        %1759 = vmatprep.subr.mxu0 0.0
        %1760 = vmatpush2.msra.mxu0 0.0
        %1761 = vmatprep.subr.mxu0 0.0
        %1762 = vmatpush2.msra.mxu0 0.0
        %1763 = vmatprep.subr.mxu0 0.0
        %1764 = vmatpush2.msra.mxu0 0.0
        %1765 = vmatprep.subr.mxu0 0.0
        %1766 = vmatpush2.msra.mxu0 0.0
        %1767 = vmatprep.subr.mxu0 0.0
        %1768 = vmatpush2.msra.mxu0 0.0
        %1769 = vmatprep.mubr.f32.mxu0 0.0
        %1770 = vmatmul.mubr.f32.gmra.mxu0 %v1153
        %v1771 = vpop.f32.mrf.mxu0
        %v1772 = vadd.f32 0.0, %v1771
        %v1773 = vpop.f32.mrf.mxu0
        %1774 = vmatprep.mubr.f32.mxu0 0.0
        %1775 = vmatmul.mubr.f32.gmra.mxu0 %v1156
        %v1776 = vpop.f32.mrf.mxu0
        %v1777 = vadd.f32 0.0, %v1776
        %v1778 = vpop.f32.mrf.mxu0
        %1779 = vmatprep.mubr.f32.mxu0 0.0
        %1780 = vmatmul.mubr.f32.gmra.mxu0 %v1159
        %v1781 = vpop.f32.mrf.mxu0
        %v1782 = vadd.f32 0.0, %v1781
        %v1783 = vpop.f32.mrf.mxu0
        %1784 = vmatprep.mubr.f32.mxu0 0.0
        %1785 = vmatmul.mubr.f32.gmra.mxu0 %v1700
        %v1786 = vpop.f32.mrf.mxu0
        %v1787 = vadd.f32 0.0, %v1786
        %v1788 = vpop.f32.mrf.mxu0
        %1789 = vdwg.mxu0
        %v1790 = vadd.f32 %v1693, %v1772
        %v1791 = vadd.f32 %v1694, %v1777
        %v1792 = vadd.f32 %v1695, %v1782
        %v1793 = vadd.f32 %v1696, %v1787
        %s1794 = scalar_lea.vmem %s4, 28
        %v1795 = vld [vmem:[%s1794] sm:$0xf]
        %v1797 = vsel %vm1047, %v1029, 0
        %v1800 = vsel %vm1060, %v1795, 0
        %1802 = vmatprep.subr.mxu0 0.0
        %1803 = vmatpush1.msra.mxu0 0.0
        %1804 = vmatprep.subr.mxu0 0.0
        %1805 = vmatpush1.msra.mxu0 0.0
        %1806 = vmatprep.subr.mxu0 0.0
        %1807 = vmatpush1.msra.mxu0 0.0
        %1808 = vmatprep.subr.mxu0 0.0
        %1809 = vmatpush1.msra.mxu0 0.0
        %1810 = vmatprep.subr.mxu0 0.0
        %1811 = vmatpush1.msra.mxu0 0.0
        %1812 = vmatprep.subr.mxu0 0.0
        %1813 = vmatpush1.msra.mxu0 0.0
        %1814 = vmatprep.subr.mxu0 0.0
        %1815 = vmatpush1.msra.mxu0 0.0
        %1816 = vmatprep.subr.mxu0 0.0
        %1817 = vmatpush1.msra.mxu0 0.0
        %1818 = vmatprep.subr.mxu0 0.0
        %1819 = vmatpush1.msra.mxu0 0.0
        %1820 = vmatprep.subr.mxu0 0.0
        %1821 = vmatpush1.msra.mxu0 0.0
        %1822 = vmatprep.subr.mxu0 0.0
        %1823 = vmatpush1.msra.mxu0 0.0
        %1824 = vmatprep.subr.mxu0 0.0
        %1825 = vmatpush1.msra.mxu0 0.0
        %1826 = vmatprep.subr.mxu0 0.0
        %1827 = vmatpush1.msra.mxu0 0.0
        %1828 = vmatprep.subr.mxu0 0.0
        %1829 = vmatpush1.msra.mxu0 0.0
        %1830 = vmatprep.subr.mxu0 0.0
        %1831 = vmatpush1.msra.mxu0 0.0
        %1832 = vmatprep.subr.mxu0 0.0
        %1833 = vmatpush1.msra.mxu0 %v1800
        %1834 = vmatprep.subr.mxu0 0.0
        %1835 = vmatpush2.msra.mxu0 0.0
        %1836 = vmatprep.subr.mxu0 0.0
        %1837 = vmatpush2.msra.mxu0 0.0
        %1838 = vmatprep.subr.mxu0 0.0
        %1839 = vmatpush2.msra.mxu0 0.0
        %1840 = vmatprep.subr.mxu0 0.0
        %1841 = vmatpush2.msra.mxu0 0.0
        %1842 = vmatprep.subr.mxu0 0.0
        %1843 = vmatpush2.msra.mxu0 0.0
        %1844 = vmatprep.subr.mxu0 0.0
        %1845 = vmatpush2.msra.mxu0 0.0
        %1846 = vmatprep.subr.mxu0 0.0
        %1847 = vmatpush2.msra.mxu0 0.0
        %1848 = vmatprep.subr.mxu0 0.0
        %1849 = vmatpush2.msra.mxu0 0.0
        %1850 = vmatprep.subr.mxu0 0.0
        %1851 = vmatpush2.msra.mxu0 0.0
        %1852 = vmatprep.subr.mxu0 0.0
        %1853 = vmatpush2.msra.mxu0 0.0
        %1854 = vmatprep.subr.mxu0 0.0
        %1855 = vmatpush2.msra.mxu0 0.0
        %1856 = vmatprep.subr.mxu0 0.0
        %1857 = vmatpush2.msra.mxu0 0.0
        %1858 = vmatprep.subr.mxu0 0.0
        %1859 = vmatpush2.msra.mxu0 0.0
        %1860 = vmatprep.subr.mxu0 0.0
        %1861 = vmatpush2.msra.mxu0 0.0
        %1862 = vmatprep.subr.mxu0 0.0
        %1863 = vmatpush2.msra.mxu0 0.0
        %1864 = vmatprep.subr.mxu0 0.0
        %1865 = vmatpush2.msra.mxu0 0.0
        %1866 = vmatprep.mubr.f32.mxu0 0.0
        %1867 = vmatmul.mubr.f32.gmra.mxu0 %v1052
        %v1868 = vpop.f32.mrf.mxu0
        %v1869 = vadd.f32 0.0, %v1868
        %v1870 = vpop.f32.mrf.mxu0
        %1871 = vmatprep.mubr.f32.mxu0 0.0
        %1872 = vmatmul.mubr.f32.gmra.mxu0 %v1055
        %v1873 = vpop.f32.mrf.mxu0
        %v1874 = vadd.f32 0.0, %v1873
        %v1875 = vpop.f32.mrf.mxu0
        %1876 = vmatprep.mubr.f32.mxu0 0.0
        %1877 = vmatmul.mubr.f32.gmra.mxu0 %v1058
        %v1878 = vpop.f32.mrf.mxu0
        %v1879 = vadd.f32 0.0, %v1878
        %v1880 = vpop.f32.mrf.mxu0
        %1881 = vmatprep.mubr.f32.mxu0 0.0
        %1882 = vmatmul.mubr.f32.gmra.mxu0 %v1797
        %v1883 = vpop.f32.mrf.mxu0
        %v1884 = vadd.f32 0.0, %v1883
        %v1885 = vpop.f32.mrf.mxu0
        %1886 = vdwg.mxu0
        %v1887 = vadd.f32 %v1790, %v1869
        %v1888 = vadd.f32 %v1791, %v1874
        %v1889 = vadd.f32 %v1792, %v1879
        %v1890 = vadd.f32 %v1793, %v1884
        %v1892 = vrot.slane %v965, 1
        %v1893 = vrot.slane %v966, 1
        %v1894 = vsel %vm439, %v1892, %v1893
        %s1895 = scalar_lea.vmem %s4, 32
        %v1896 = vld [vmem:[%s1895] sm:$0xf]
        %v1897 = vsel %vm1047, %v1894, 0
        %v1900 = vsel %vm1060, %v1896, 0
        %1902 = vmatprep.subr.mxu0 0.0
        %1903 = vmatpush1.msra.mxu0 0.0
        %1904 = vmatprep.subr.mxu0 0.0
        %1905 = vmatpush1.msra.mxu0 0.0
        %1906 = vmatprep.subr.mxu0 0.0
        %1907 = vmatpush1.msra.mxu0 0.0
        %1908 = vmatprep.subr.mxu0 0.0
        %1909 = vmatpush1.msra.mxu0 0.0
        %1910 = vmatprep.subr.mxu0 0.0
        %1911 = vmatpush1.msra.mxu0 0.0
        %1912 = vmatprep.subr.mxu0 0.0
        %1913 = vmatpush1.msra.mxu0 0.0
        %1914 = vmatprep.subr.mxu0 0.0
        %1915 = vmatpush1.msra.mxu0 0.0
        %1916 = vmatprep.subr.mxu0 0.0
        %1917 = vmatpush1.msra.mxu0 0.0
        %1918 = vmatprep.subr.mxu0 0.0
        %1919 = vmatpush1.msra.mxu0 0.0
        %1920 = vmatprep.subr.mxu0 0.0
        %1921 = vmatpush1.msra.mxu0 0.0
        %1922 = vmatprep.subr.mxu0 0.0
        %1923 = vmatpush1.msra.mxu0 0.0
        %1924 = vmatprep.subr.mxu0 0.0
        %1925 = vmatpush1.msra.mxu0 0.0
        %1926 = vmatprep.subr.mxu0 0.0
        %1927 = vmatpush1.msra.mxu0 0.0
        %1928 = vmatprep.subr.mxu0 0.0
        %1929 = vmatpush1.msra.mxu0 0.0
        %1930 = vmatprep.subr.mxu0 0.0
        %1931 = vmatpush1.msra.mxu0 0.0
        %1932 = vmatprep.subr.mxu0 0.0
        %1933 = vmatpush1.msra.mxu0 %v1900
        %1934 = vmatprep.subr.mxu0 0.0
        %1935 = vmatpush2.msra.mxu0 0.0
        %1936 = vmatprep.subr.mxu0 0.0
        %1937 = vmatpush2.msra.mxu0 0.0
        %1938 = vmatprep.subr.mxu0 0.0
        %1939 = vmatpush2.msra.mxu0 0.0
        %1940 = vmatprep.subr.mxu0 0.0
        %1941 = vmatpush2.msra.mxu0 0.0
        %1942 = vmatprep.subr.mxu0 0.0
        %1943 = vmatpush2.msra.mxu0 0.0
        %1944 = vmatprep.subr.mxu0 0.0
        %1945 = vmatpush2.msra.mxu0 0.0
        %1946 = vmatprep.subr.mxu0 0.0
        %1947 = vmatpush2.msra.mxu0 0.0
        %1948 = vmatprep.subr.mxu0 0.0
        %1949 = vmatpush2.msra.mxu0 0.0
        %1950 = vmatprep.subr.mxu0 0.0
        %1951 = vmatpush2.msra.mxu0 0.0
        %1952 = vmatprep.subr.mxu0 0.0
        %1953 = vmatpush2.msra.mxu0 0.0
        %1954 = vmatprep.subr.mxu0 0.0
        %1955 = vmatpush2.msra.mxu0 0.0
        %1956 = vmatprep.subr.mxu0 0.0
        %1957 = vmatpush2.msra.mxu0 0.0
        %1958 = vmatprep.subr.mxu0 0.0
        %1959 = vmatpush2.msra.mxu0 0.0
        %1960 = vmatprep.subr.mxu0 0.0
        %1961 = vmatpush2.msra.mxu0 0.0
        %1962 = vmatprep.subr.mxu0 0.0
        %1963 = vmatpush2.msra.mxu0 0.0
        %1964 = vmatprep.subr.mxu0 0.0
        %1965 = vmatpush2.msra.mxu0 0.0
        %1966 = vmatprep.mubr.f32.mxu0 0.0
        %1967 = vmatmul.mubr.f32.gmra.mxu0 %v1269
        %v1968 = vpop.f32.mrf.mxu0
        %v1969 = vadd.f32 0.0, %v1968
        %v1970 = vpop.f32.mrf.mxu0
        %1971 = vmatprep.mubr.f32.mxu0 0.0
        %1972 = vmatmul.mubr.f32.gmra.mxu0 %v1271
        %v1973 = vpop.f32.mrf.mxu0
        %v1974 = vadd.f32 0.0, %v1973
        %v1975 = vpop.f32.mrf.mxu0
        %1976 = vmatprep.mubr.f32.mxu0 0.0
        %1977 = vmatmul.mubr.f32.gmra.mxu0 %v1273
        %v1978 = vpop.f32.mrf.mxu0
        %v1979 = vadd.f32 0.0, %v1978
        %v1980 = vpop.f32.mrf.mxu0
        %1981 = vmatprep.mubr.f32.mxu0 0.0
        %1982 = vmatmul.mubr.f32.gmra.mxu0 %v1897
        %v1983 = vpop.f32.mrf.mxu0
        %v1984 = vadd.f32 0.0, %v1983
        %v1985 = vpop.f32.mrf.mxu0
        %1986 = vdwg.mxu0
        %v1987 = vadd.f32 %v1887, %v1969
        %v1988 = vadd.f32 %v1888, %v1974
        %v1989 = vadd.f32 %v1889, %v1979
        %v1990 = vadd.f32 %v1890, %v1984
        %v1991 = vld [vmem:[%s5] sm:$0x1]
        %v1993 = vlaneseq
        %v1994 = vshrl.u32 %v1993, 7
        %v1995 = vsub.s32 0, %v1994
        %v1996 = vrot.slane %v1991, %v1995
        %v1998 = vadd.f32 %v1987, %v1996
        %v1999 = vadd.f32 %v1988, %v1996
        %v2000 = vadd.f32 %v1989, %v1996
        %v2001 = vadd.f32 %v1990, %v1996
        %vm2002 = vcmask 261120
        %2003 = vst.msk [vmem:[%s303] sm:$0xff] %vm2002, %v1998
        %2004 = vst.msk [vmem:[%s303 + $0x8] sm:$0xff] %vm2002, %v1999
        %2005 = vst.msk [vmem:[%s303 + $0x10] sm:$0xff] %vm2002, %v2000
        %2006 = vst.msk [vmem:[%s303 + $0x18] sm:$0xff] %vm2002, %v2001
        %s2007 = sand.u32 %s188, 1
        %s2008 = scalar_lea.sflag [#allocation3], %s2007
        %s2009 = sand.u32 %s188, 1
        %s2010 = smul.addr %s2009, 32
        %s2011 = scalar_lea.vmem [#allocation2], %s2010
        // Predicated region
        $region45: #{conv_downsample2d_forward.1} parent=43 // pred_check
          %p2012 = pneg %p198
        $region46: #{conv_downsample2d_forward.1} parent=43 // pred_check_branch
          %2014 = sbr.rel (%p2012) target = $region48
        $region47: #{conv_downsample2d_forward.1} parent=43 // pred_region
          %s2015 = smul.u32 4, %s25
          %s2017 = ssub.s32 512, 512
          %2018 = vsyncadd %s2008, %s2017
          %s2019 = smul.addr %s24, 8
          %s2020 = sadd.s32 %s2015, %s2019
          %s2021 = smul.addr %s2020, 128
          %s2022 = scalar_lea.hbm %s6, %s2021
          %s2023 = sshll.u32 %s2011, 4
          %s2024 = int_to_ptr.vmem [resolvable:$true] %s2023
          %2029 = dma.vmem_to_hbm [thread:$0]  %s2024, 512, %s2022, %s2008, 128, 128, 8
        $region48: #{conv_downsample2d_forward.1} parent=43 // pred_fallthru
          _
      $region44: #{conv_downsample2d_forward.1} parent=5 // pred_fallthru
        _
      %p2030 = scmp.le.s32.totalorder 2, %s15
      // Predicated region
      $region49: #{conv_downsample2d_forward.1} parent=5 // pred_check
        %p2031 = pneg %p2030
      $region50: #{conv_downsample2d_forward.1} parent=5 // pred_check_branch
        %2033 = sbr.rel (%p2031) target = $region52
      $region51: #{conv_downsample2d_forward.1} parent=5 // pred_region
        %s2034 = ssub.s32 %s15, 2
        // Predicated region
        $region53: #{conv_downsample2d_forward.1} parent=51 // pred_check
          %p2035 = pneg %p204
        $region54: #{conv_downsample2d_forward.1} parent=51 // pred_check_branch
          %2037 = sbr.rel (%p2035) target = $region56
        $region55: #{conv_downsample2d_forward.1} parent=51 // pred_region
          %s2038 = sand.u32 %s189, 1
          %s2039 = scalar_lea.sflag [#allocation3], %s2038
          %s2040 = sand.u32 %s189, 1
          %s2041 = smul.addr %s2040, 32
          %s2042 = scalar_lea.vmem [#allocation2], %s2041
          %2043 = dma.done %s2039, 512
        $region56: #{conv_downsample2d_forward.1} parent=51 // pred_fallthru
          _
      $region52: #{conv_downsample2d_forward.1} parent=5 // pred_fallthru
        _
    $region6: #{conv_downsample2d_forward.1} parent=1 // loop_footer
      %s19 = sadd.s32 1, %s15
    $region7: #{conv_downsample2d_forward.1} parent=1 // loop_footer_branch
      %14 = sbr.rel target = $region3
    $region8: #{conv_downsample2d_forward.1} parent=1 // loop_exit
      _
    %2044 = vsyncpa [#allocation3], 1
    %s2045 = scalar_lea.sflag [#allocation3], 1
    %2046 = vsyncpa %s2045, 1

</llo_original>
